<compile_context>
chip_gen: v5e
topology: v5e:2x2
jax: 0.10.0
libtpu: 0.0.40
codegen_flags: <defaults>
</compile_context>

<pallas_src>
import functools

import jax
import jax.numpy as jnp
from jax.experimental import pallas as pl
from jax.experimental.pallas import tpu as pltpu

THRESH = 0.5
DECAY = 0.2


def scnn_kernel(x_ref, u_ref, w_ref, b_ref, out_ref, *, time_window):
    # x_ref:   (B, F)      image intensities in [0, 1]
    # u_ref:   (T, B, F)   uniform [0, 1) randoms for the Bernoulli encoder
    # w_ref:   (F, O_pad)  fc1 weight (zero-padded rows/cols)
    # b_ref:   (1, O_pad)  fc1 bias   (zero-padded cols)
    # out_ref: (B, O_pad)  mean spike count over the time window
    x = x_ref[...]
    u = u_ref[...]
    w = w_ref[...]
    b = b_ref[...]
    T, B, F = u.shape
    O = w.shape[1]

    # ---- Bernoulli spike encoding for ALL time steps at once --------------
    # Padded feature columns have x = 0, so (0 > u) is always False there
    # (and their weight rows are zero anyway).
    xs = (x[None, :, :] > u).astype(jnp.float32)              # (T, B, F)

    # ---- One big MXU matmul (fc1) for all time steps, bias added once -----
    cur = jnp.dot(xs.reshape(T * B, F), w,
                  preferred_element_type=jnp.float32) + b      # (T*B, O)
    cur = cur.reshape(T, B, O)

    # ---- Leaky integrate-and-fire recurrence: pure VPU work, unrolled -----
    mem = jnp.zeros((B, O), jnp.float32)
    spike = jnp.zeros((B, O), jnp.float32)
    sumspike = jnp.zeros((B, O), jnp.float32)
    for t in range(time_window):              # static trip count -> unrolled
        mem = mem * DECAY * (1.0 - spike) + cur[t]
        spike = (mem > THRESH).astype(jnp.float32)
        sumspike = sumspike + spike

    out_ref[...] = sumspike * (1.0 / time_window)


def scnn_forward(x, w, b, key, time_window=20):
    """x: (B, F) float32 in [0,1]; w: (F, O); b: (O,). Returns (B, O)."""
    B, F = x.shape
    O = w.shape[1]
    F_pad = ((F + 127) // 128) * 128          # lane-align the contraction dim
    O_pad = ((O + 127) // 128) * 128          # lane-dense output (10 -> 128)

    x_p = jnp.pad(x.astype(jnp.float32), ((0, 0), (0, F_pad - F)))
    w_p = jnp.pad(w.astype(jnp.float32), ((0, F_pad - F), (0, O_pad - O)))
    b_p = jnp.pad(b.astype(jnp.float32).reshape(1, O), ((0, 0), (0, O_pad - O)))

    # Uniform randoms for every (time step, batch row, feature).
    u = jax.random.uniform(key, (time_window, B, F_pad), dtype=jnp.float32)

    kernel = functools.partial(scnn_kernel, time_window=time_window)
    out_pad = pl.pallas_call(
        kernel,
        out_shape=jax.ShapeDtypeStruct((B, O_pad), jnp.float32),
        in_specs=[
            pl.BlockSpec(memory_space=pltpu.MemorySpace.VMEM),   # x
            pl.BlockSpec(memory_space=pltpu.MemorySpace.VMEM),   # uniforms
            pl.BlockSpec(memory_space=pltpu.MemorySpace.VMEM),   # w
            pl.BlockSpec(memory_space=pltpu.MemorySpace.VMEM),   # b
        ],
        out_specs=pl.BlockSpec(memory_space=pltpu.MemorySpace.VMEM),
    )(x_p, u, w_p, b_p)

    return out_pad[:, :O]


if __name__ == "__main__":
    # Small shapes consistent with the module: fc1 is 784 -> 10, batch kept small.
    B, F, O = 8, 784, 10
    TIME_WINDOW = 20

    key = jax.random.PRNGKey(0)
    kx, kw, kb, ku = jax.random.split(key, 4)

    # Input image intensities in [0, 1] (flattened 1x28x28).
    x = jax.random.uniform(kx, (B, F), dtype=jnp.float32)

    # Deterministic nn.Linear(784, 10)-style init: U(-1/sqrt(784), 1/sqrt(784)).
    bound = 1.0 / (F ** 0.5)
    w = jax.random.uniform(kw, (F, O), dtype=jnp.float32, minval=-bound, maxval=bound)
    b = jax.random.uniform(kb, (O,), dtype=jnp.float32, minval=-bound, maxval=bound)

    out = scnn_forward(x, w, b, ku, time_window=TIME_WINDOW)
    out = jax.block_until_ready(out)

    assert out.shape == (B, O)
    assert bool(jnp.all(out >= 0.0)) and bool(jnp.all(out <= 1.0))
    print("KERNEL_OK")
</pallas_src>

<mosaic_0001>
module attributes {stable_mosaic.version = 11 : i64} {
  func.func @scnn_kernel(%arg0: memref<8x896xf32, #tpu.memory_space<vmem>>, %arg1: memref<20x8x896xf32, #tpu.memory_space<vmem>>, %arg2: memref<896x128xf32, #tpu.memory_space<vmem>>, %arg3: memref<1x128xf32, #tpu.memory_space<vmem>>, %arg4: memref<8x128xf32, #tpu.memory_space<vmem>>) attributes {dimension_semantics = [], scalar_prefetch = 0 : i64, scratch_operands = 0 : i64, tpu.core_type = #tpu.core_type<tc>} {
    %c0 = arith.constant 0 : index
    %c0_0 = arith.constant 0 : index
    %0 = vector.load %arg0[%c0, %c0_0] : memref<8x896xf32, #tpu.memory_space<vmem>>, vector<8x896xf32>
    %c0_1 = arith.constant 0 : index
    %c0_2 = arith.constant 0 : index
    %c0_3 = arith.constant 0 : index
    %1 = vector.load %arg1[%c0_1, %c0_2, %c0_3] : memref<20x8x896xf32, #tpu.memory_space<vmem>>, vector<20x8x896xf32>
    %c0_4 = arith.constant 0 : index
    %c0_5 = arith.constant 0 : index
    %2 = vector.load %arg2[%c0_4, %c0_5] : memref<896x128xf32, #tpu.memory_space<vmem>>, vector<896x128xf32>
    %c0_6 = arith.constant 0 : index
    %c0_7 = arith.constant 0 : index
    %3 = vector.load %arg3[%c0_6, %c0_7] : memref<1x128xf32, #tpu.memory_space<vmem>>, vector<1x128xf32>
    %4 = vector.shape_cast %0 : vector<8x896xf32> to vector<1x8x896xf32>
    %5 = vector.broadcast %4 : vector<1x8x896xf32> to vector<20x8x896xf32>
    %6 = arith.cmpf ogt, %5, %1 : vector<20x8x896xf32>
    %7 = arith.extui %6 : vector<20x8x896xi1> to vector<20x8x896xi32>
    %8 = arith.sitofp %7 : vector<20x8x896xi32> to vector<20x8x896xf32>
    %9 = vector.shape_cast %8 : vector<20x8x896xf32> to vector<160x896xf32>
    %cst = arith.constant dense<0.000000e+00> : vector<160x128xf32>
    %10 = tpu.matmul %9, %2, %cst {dimension_numbers = #tpu.dot_dimension_numbers<[1], [0], [0], [1], [0, 0, 1, 1], [], []>} : vector<160x896xf32>, vector<896x128xf32>, vector<160x128xf32> -> vector<160x128xf32>
    %11 = vector.broadcast %3 : vector<1x128xf32> to vector<160x128xf32>
    %12 = arith.addf %10, %11 : vector<160x128xf32>
    %13 = vector.shape_cast %12 : vector<160x128xf32> to vector<20x8x128xf32>
    %cst_8 = arith.constant 0.000000e+00 : f32
    %14 = vector.broadcast %cst_8 : f32 to vector<8x128xf32>
    %cst_9 = arith.constant 0.000000e+00 : f32
    %15 = vector.broadcast %cst_9 : f32 to vector<8x128xf32>
    %cst_10 = arith.constant 0.000000e+00 : f32
    %16 = vector.broadcast %cst_10 : f32 to vector<8x128xf32>
    %cst_11 = arith.constant 2.000000e-01 : f32
    %17 = vector.broadcast %cst_11 : f32 to vector<8x128xf32>
    %18 = arith.mulf %14, %17 : vector<8x128xf32>
    %cst_12 = arith.constant 1.000000e+00 : f32
    %19 = vector.broadcast %cst_12 : f32 to vector<8x128xf32>
    %20 = arith.subf %19, %15 : vector<8x128xf32>
    %21 = arith.mulf %18, %20 : vector<8x128xf32>
    %22 = vector.extract_strided_slice %13 {offsets = [0, 0, 0], sizes = [1, 8, 128], strides = [1, 1, 1]} : vector<20x8x128xf32> to vector<1x8x128xf32>
    %23 = vector.shape_cast %22 : vector<1x8x128xf32> to vector<8x128xf32>
    %24 = arith.addf %21, %23 : vector<8x128xf32>
    %cst_13 = arith.constant 5.000000e-01 : f32
    %25 = vector.broadcast %cst_13 : f32 to vector<8x128xf32>
    %26 = arith.cmpf ogt, %24, %25 : vector<8x128xf32>
    %27 = arith.extui %26 : vector<8x128xi1> to vector<8x128xi32>
    %28 = arith.sitofp %27 : vector<8x128xi32> to vector<8x128xf32>
    %29 = arith.addf %16, %28 : vector<8x128xf32>
    %cst_14 = arith.constant 2.000000e-01 : f32
    %30 = vector.broadcast %cst_14 : f32 to vector<8x128xf32>
    %31 = arith.mulf %24, %30 : vector<8x128xf32>
    %cst_15 = arith.constant 1.000000e+00 : f32
    %32 = vector.broadcast %cst_15 : f32 to vector<8x128xf32>
    %33 = arith.subf %32, %28 : vector<8x128xf32>
    %34 = arith.mulf %31, %33 : vector<8x128xf32>
    %35 = vector.extract_strided_slice %13 {offsets = [1, 0, 0], sizes = [1, 8, 128], strides = [1, 1, 1]} : vector<20x8x128xf32> to vector<1x8x128xf32>
    %36 = vector.shape_cast %35 : vector<1x8x128xf32> to vector<8x128xf32>
    %37 = arith.addf %34, %36 : vector<8x128xf32>
    %cst_16 = arith.constant 5.000000e-01 : f32
    %38 = vector.broadcast %cst_16 : f32 to vector<8x128xf32>
    %39 = arith.cmpf ogt, %37, %38 : vector<8x128xf32>
    %40 = arith.extui %39 : vector<8x128xi1> to vector<8x128xi32>
    %41 = arith.sitofp %40 : vector<8x128xi32> to vector<8x128xf32>
    %42 = arith.addf %29, %41 : vector<8x128xf32>
    %cst_17 = arith.constant 2.000000e-01 : f32
    %43 = vector.broadcast %cst_17 : f32 to vector<8x128xf32>
    %44 = arith.mulf %37, %43 : vector<8x128xf32>
    %cst_18 = arith.constant 1.000000e+00 : f32
    %45 = vector.broadcast %cst_18 : f32 to vector<8x128xf32>
    %46 = arith.subf %45, %41 : vector<8x128xf32>
    %47 = arith.mulf %44, %46 : vector<8x128xf32>
    %48 = vector.extract_strided_slice %13 {offsets = [2, 0, 0], sizes = [1, 8, 128], strides = [1, 1, 1]} : vector<20x8x128xf32> to vector<1x8x128xf32>
    %49 = vector.shape_cast %48 : vector<1x8x128xf32> to vector<8x128xf32>
    %50 = arith.addf %47, %49 : vector<8x128xf32>
    %cst_19 = arith.constant 5.000000e-01 : f32
    %51 = vector.broadcast %cst_19 : f32 to vector<8x128xf32>
    %52 = arith.cmpf ogt, %50, %51 : vector<8x128xf32>
    %53 = arith.extui %52 : vector<8x128xi1> to vector<8x128xi32>
    %54 = arith.sitofp %53 : vector<8x128xi32> to vector<8x128xf32>
    %55 = arith.addf %42, %54 : vector<8x128xf32>
    %cst_20 = arith.constant 2.000000e-01 : f32
    %56 = vector.broadcast %cst_20 : f32 to vector<8x128xf32>
    %57 = arith.mulf %50, %56 : vector<8x128xf32>
    %cst_21 = arith.constant 1.000000e+00 : f32
    %58 = vector.broadcast %cst_21 : f32 to vector<8x128xf32>
    %59 = arith.subf %58, %54 : vector<8x128xf32>
    %60 = arith.mulf %57, %59 : vector<8x128xf32>
    %61 = vector.extract_strided_slice %13 {offsets = [3, 0, 0], sizes = [1, 8, 128], strides = [1, 1, 1]} : vector<20x8x128xf32> to vector<1x8x128xf32>
    %62 = vector.shape_cast %61 : vector<1x8x128xf32> to vector<8x128xf32>
    %63 = arith.addf %60, %62 : vector<8x128xf32>
    %cst_22 = arith.constant 5.000000e-01 : f32
    %64 = vector.broadcast %cst_22 : f32 to vector<8x128xf32>
    %65 = arith.cmpf ogt, %63, %64 : vector<8x128xf32>
    %66 = arith.extui %65 : vector<8x128xi1> to vector<8x128xi32>
    %67 = arith.sitofp %66 : vector<8x128xi32> to vector<8x128xf32>
    %68 = arith.addf %55, %67 : vector<8x128xf32>
    %cst_23 = arith.constant 2.000000e-01 : f32
    %69 = vector.broadcast %cst_23 : f32 to vector<8x128xf32>
    %70 = arith.mulf %63, %69 : vector<8x128xf32>
    %cst_24 = arith.constant 1.000000e+00 : f32
    %71 = vector.broadcast %cst_24 : f32 to vector<8x128xf32>
    %72 = arith.subf %71, %67 : vector<8x128xf32>
    %73 = arith.mulf %70, %72 : vector<8x128xf32>
    %74 = vector.extract_strided_slice %13 {offsets = [4, 0, 0], sizes = [1, 8, 128], strides = [1, 1, 1]} : vector<20x8x128xf32> to vector<1x8x128xf32>
    %75 = vector.shape_cast %74 : vector<1x8x128xf32> to vector<8x128xf32>
    %76 = arith.addf %73, %75 : vector<8x128xf32>
    %cst_25 = arith.constant 5.000000e-01 : f32
    %77 = vector.broadcast %cst_25 : f32 to vector<8x128xf32>
    %78 = arith.cmpf ogt, %76, %77 : vector<8x128xf32>
    %79 = arith.extui %78 : vector<8x128xi1> to vector<8x128xi32>
    %80 = arith.sitofp %79 : vector<8x128xi32> to vector<8x128xf32>
    %81 = arith.addf %68, %80 : vector<8x128xf32>
    %cst_26 = arith.constant 2.000000e-01 : f32
    %82 = vector.broadcast %cst_26 : f32 to vector<8x128xf32>
    %83 = arith.mulf %76, %82 : vector<8x128xf32>
    %cst_27 = arith.constant 1.000000e+00 : f32
    %84 = vector.broadcast %cst_27 : f32 to vector<8x128xf32>
    %85 = arith.subf %84, %80 : vector<8x128xf32>
    %86 = arith.mulf %83, %85 : vector<8x128xf32>
    %87 = vector.extract_strided_slice %13 {offsets = [5, 0, 0], sizes = [1, 8, 128], strides = [1, 1, 1]} : vector<20x8x128xf32> to vector<1x8x128xf32>
    %88 = vector.shape_cast %87 : vector<1x8x128xf32> to vector<8x128xf32>
    %89 = arith.addf %86, %88 : vector<8x128xf32>
    %cst_28 = arith.constant 5.000000e-01 : f32
    %90 = vector.broadcast %cst_28 : f32 to vector<8x128xf32>
    %91 = arith.cmpf ogt, %89, %90 : vector<8x128xf32>
    %92 = arith.extui %91 : vector<8x128xi1> to vector<8x128xi32>
    %93 = arith.sitofp %92 : vector<8x128xi32> to vector<8x128xf32>
    %94 = arith.addf %81, %93 : vector<8x128xf32>
    %cst_29 = arith.constant 2.000000e-01 : f32
    %95 = vector.broadcast %cst_29 : f32 to vector<8x128xf32>
    %96 = arith.mulf %89, %95 : vector<8x128xf32>
    %cst_30 = arith.constant 1.000000e+00 : f32
    %97 = vector.broadcast %cst_30 : f32 to vector<8x128xf32>
    %98 = arith.subf %97, %93 : vector<8x128xf32>
    %99 = arith.mulf %96, %98 : vector<8x128xf32>
    %100 = vector.extract_strided_slice %13 {offsets = [6, 0, 0], sizes = [1, 8, 128], strides = [1, 1, 1]} : vector<20x8x128xf32> to vector<1x8x128xf32>
    %101 = vector.shape_cast %100 : vector<1x8x128xf32> to vector<8x128xf32>
    %102 = arith.addf %99, %101 : vector<8x128xf32>
    %cst_31 = arith.constant 5.000000e-01 : f32
    %103 = vector.broadcast %cst_31 : f32 to vector<8x128xf32>
    %104 = arith.cmpf ogt, %102, %103 : vector<8x128xf32>
    %105 = arith.extui %104 : vector<8x128xi1> to vector<8x128xi32>
    %106 = arith.sitofp %105 : vector<8x128xi32> to vector<8x128xf32>
    %107 = arith.addf %94, %106 : vector<8x128xf32>
    %cst_32 = arith.constant 2.000000e-01 : f32
    %108 = vector.broadcast %cst_32 : f32 to vector<8x128xf32>
    %109 = arith.mulf %102, %108 : vector<8x128xf32>
    %cst_33 = arith.constant 1.000000e+00 : f32
    %110 = vector.broadcast %cst_33 : f32 to vector<8x128xf32>
    %111 = arith.subf %110, %106 : vector<8x128xf32>
    %112 = arith.mulf %109, %111 : vector<8x128xf32>
    %113 = vector.extract_strided_slice %13 {offsets = [7, 0, 0], sizes = [1, 8, 128], strides = [1, 1, 1]} : vector<20x8x128xf32> to vector<1x8x128xf32>
    %114 = vector.shape_cast %113 : vector<1x8x128xf32> to vector<8x128xf32>
    %115 = arith.addf %112, %114 : vector<8x128xf32>
    %cst_34 = arith.constant 5.000000e-01 : f32
    %116 = vector.broadcast %cst_34 : f32 to vector<8x128xf32>
    %117 = arith.cmpf ogt, %115, %116 : vector<8x128xf32>
    %118 = arith.extui %117 : vector<8x128xi1> to vector<8x128xi32>
    %119 = arith.sitofp %118 : vector<8x128xi32> to vector<8x128xf32>
    %120 = arith.addf %107, %119 : vector<8x128xf32>
    %cst_35 = arith.constant 2.000000e-01 : f32
    %121 = vector.broadcast %cst_35 : f32 to vector<8x128xf32>
    %122 = arith.mulf %115, %121 : vector<8x128xf32>
    %cst_36 = arith.constant 1.000000e+00 : f32
    %123 = vector.broadcast %cst_36 : f32 to vector<8x128xf32>
    %124 = arith.subf %123, %119 : vector<8x128xf32>
    %125 = arith.mulf %122, %124 : vector<8x128xf32>
    %126 = vector.extract_strided_slice %13 {offsets = [8, 0, 0], sizes = [1, 8, 128], strides = [1, 1, 1]} : vector<20x8x128xf32> to vector<1x8x128xf32>
    %127 = vector.shape_cast %126 : vector<1x8x128xf32> to vector<8x128xf32>
    %128 = arith.addf %125, %127 : vector<8x128xf32>
    %cst_37 = arith.constant 5.000000e-01 : f32
    %129 = vector.broadcast %cst_37 : f32 to vector<8x128xf32>
    %130 = arith.cmpf ogt, %128, %129 : vector<8x128xf32>
    %131 = arith.extui %130 : vector<8x128xi1> to vector<8x128xi32>
    %132 = arith.sitofp %131 : vector<8x128xi32> to vector<8x128xf32>
    %133 = arith.addf %120, %132 : vector<8x128xf32>
    %cst_38 = arith.constant 2.000000e-01 : f32
    %134 = vector.broadcast %cst_38 : f32 to vector<8x128xf32>
    %135 = arith.mulf %128, %134 : vector<8x128xf32>
    %cst_39 = arith.constant 1.000000e+00 : f32
    %136 = vector.broadcast %cst_39 : f32 to vector<8x128xf32>
    %137 = arith.subf %136, %132 : vector<8x128xf32>
    %138 = arith.mulf %135, %137 : vector<8x128xf32>
    %139 = vector.extract_strided_slice %13 {offsets = [9, 0, 0], sizes = [1, 8, 128], strides = [1, 1, 1]} : vector<20x8x128xf32> to vector<1x8x128xf32>
    %140 = vector.shape_cast %139 : vector<1x8x128xf32> to vector<8x128xf32>
    %141 = arith.addf %138, %140 : vector<8x128xf32>
    %cst_40 = arith.constant 5.000000e-01 : f32
    %142 = vector.broadcast %cst_40 : f32 to vector<8x128xf32>
    %143 = arith.cmpf ogt, %141, %142 : vector<8x128xf32>
    %144 = arith.extui %143 : vector<8x128xi1> to vector<8x128xi32>
    %145 = arith.sitofp %144 : vector<8x128xi32> to vector<8x128xf32>
    %146 = arith.addf %133, %145 : vector<8x128xf32>
    %cst_41 = arith.constant 2.000000e-01 : f32
    %147 = vector.broadcast %cst_41 : f32 to vector<8x128xf32>
    %148 = arith.mulf %141, %147 : vector<8x128xf32>
    %cst_42 = arith.constant 1.000000e+00 : f32
    %149 = vector.broadcast %cst_42 : f32 to vector<8x128xf32>
    %150 = arith.subf %149, %145 : vector<8x128xf32>
    %151 = arith.mulf %148, %150 : vector<8x128xf32>
    %152 = vector.extract_strided_slice %13 {offsets = [10, 0, 0], sizes = [1, 8, 128], strides = [1, 1, 1]} : vector<20x8x128xf32> to vector<1x8x128xf32>
    %153 = vector.shape_cast %152 : vector<1x8x128xf32> to vector<8x128xf32>
    %154 = arith.addf %151, %153 : vector<8x128xf32>
    %cst_43 = arith.constant 5.000000e-01 : f32
    %155 = vector.broadcast %cst_43 : f32 to vector<8x128xf32>
    %156 = arith.cmpf ogt, %154, %155 : vector<8x128xf32>
    %157 = arith.extui %156 : vector<8x128xi1> to vector<8x128xi32>
    %158 = arith.sitofp %157 : vector<8x128xi32> to vector<8x128xf32>
    %159 = arith.addf %146, %158 : vector<8x128xf32>
    %cst_44 = arith.constant 2.000000e-01 : f32
    %160 = vector.broadcast %cst_44 : f32 to vector<8x128xf32>
    %161 = arith.mulf %154, %160 : vector<8x128xf32>
    %cst_45 = arith.constant 1.000000e+00 : f32
    %162 = vector.broadcast %cst_45 : f32 to vector<8x128xf32>
    %163 = arith.subf %162, %158 : vector<8x128xf32>
    %164 = arith.mulf %161, %163 : vector<8x128xf32>
    %165 = vector.extract_strided_slice %13 {offsets = [11, 0, 0], sizes = [1, 8, 128], strides = [1, 1, 1]} : vector<20x8x128xf32> to vector<1x8x128xf32>
    %166 = vector.shape_cast %165 : vector<1x8x128xf32> to vector<8x128xf32>
    %167 = arith.addf %164, %166 : vector<8x128xf32>
    %cst_46 = arith.constant 5.000000e-01 : f32
    %168 = vector.broadcast %cst_46 : f32 to vector<8x128xf32>
    %169 = arith.cmpf ogt, %167, %168 : vector<8x128xf32>
    %170 = arith.extui %169 : vector<8x128xi1> to vector<8x128xi32>
    %171 = arith.sitofp %170 : vector<8x128xi32> to vector<8x128xf32>
    %172 = arith.addf %159, %171 : vector<8x128xf32>
    %cst_47 = arith.constant 2.000000e-01 : f32
    %173 = vector.broadcast %cst_47 : f32 to vector<8x128xf32>
    %174 = arith.mulf %167, %173 : vector<8x128xf32>
    %cst_48 = arith.constant 1.000000e+00 : f32
    %175 = vector.broadcast %cst_48 : f32 to vector<8x128xf32>
    %176 = arith.subf %175, %171 : vector<8x128xf32>
    %177 = arith.mulf %174, %176 : vector<8x128xf32>
    %178 = vector.extract_strided_slice %13 {offsets = [12, 0, 0], sizes = [1, 8, 128], strides = [1, 1, 1]} : vector<20x8x128xf32> to vector<1x8x128xf32>
    %179 = vector.shape_cast %178 : vector<1x8x128xf32> to vector<8x128xf32>
    %180 = arith.addf %177, %179 : vector<8x128xf32>
    %cst_49 = arith.constant 5.000000e-01 : f32
    %181 = vector.broadcast %cst_49 : f32 to vector<8x128xf32>
    %182 = arith.cmpf ogt, %180, %181 : vector<8x128xf32>
    %183 = arith.extui %182 : vector<8x128xi1> to vector<8x128xi32>
    %184 = arith.sitofp %183 : vector<8x128xi32> to vector<8x128xf32>
    %185 = arith.addf %172, %184 : vector<8x128xf32>
    %cst_50 = arith.constant 2.000000e-01 : f32
    %186 = vector.broadcast %cst_50 : f32 to vector<8x128xf32>
    %187 = arith.mulf %180, %186 : vector<8x128xf32>
    %cst_51 = arith.constant 1.000000e+00 : f32
    %188 = vector.broadcast %cst_51 : f32 to vector<8x128xf32>
    %189 = arith.subf %188, %184 : vector<8x128xf32>
    %190 = arith.mulf %187, %189 : vector<8x128xf32>
    %191 = vector.extract_strided_slice %13 {offsets = [13, 0, 0], sizes = [1, 8, 128], strides = [1, 1, 1]} : vector<20x8x128xf32> to vector<1x8x128xf32>
    %192 = vector.shape_cast %191 : vector<1x8x128xf32> to vector<8x128xf32>
    %193 = arith.addf %190, %192 : vector<8x128xf32>
    %cst_52 = arith.constant 5.000000e-01 : f32
    %194 = vector.broadcast %cst_52 : f32 to vector<8x128xf32>
    %195 = arith.cmpf ogt, %193, %194 : vector<8x128xf32>
    %196 = arith.extui %195 : vector<8x128xi1> to vector<8x128xi32>
    %197 = arith.sitofp %196 : vector<8x128xi32> to vector<8x128xf32>
    %198 = arith.addf %185, %197 : vector<8x128xf32>
    %cst_53 = arith.constant 2.000000e-01 : f32
    %199 = vector.broadcast %cst_53 : f32 to vector<8x128xf32>
    %200 = arith.mulf %193, %199 : vector<8x128xf32>
    %cst_54 = arith.constant 1.000000e+00 : f32
    %201 = vector.broadcast %cst_54 : f32 to vector<8x128xf32>
    %202 = arith.subf %201, %197 : vector<8x128xf32>
    %203 = arith.mulf %200, %202 : vector<8x128xf32>
    %204 = vector.extract_strided_slice %13 {offsets = [14, 0, 0], sizes = [1, 8, 128], strides = [1, 1, 1]} : vector<20x8x128xf32> to vector<1x8x128xf32>
    %205 = vector.shape_cast %204 : vector<1x8x128xf32> to vector<8x128xf32>
    %206 = arith.addf %203, %205 : vector<8x128xf32>
    %cst_55 = arith.constant 5.000000e-01 : f32
    %207 = vector.broadcast %cst_55 : f32 to vector<8x128xf32>
    %208 = arith.cmpf ogt, %206, %207 : vector<8x128xf32>
    %209 = arith.extui %208 : vector<8x128xi1> to vector<8x128xi32>
    %210 = arith.sitofp %209 : vector<8x128xi32> to vector<8x128xf32>
    %211 = arith.addf %198, %210 : vector<8x128xf32>
    %cst_56 = arith.constant 2.000000e-01 : f32
    %212 = vector.broadcast %cst_56 : f32 to vector<8x128xf32>
    %213 = arith.mulf %206, %212 : vector<8x128xf32>
    %cst_57 = arith.constant 1.000000e+00 : f32
    %214 = vector.broadcast %cst_57 : f32 to vector<8x128xf32>
    %215 = arith.subf %214, %210 : vector<8x128xf32>
    %216 = arith.mulf %213, %215 : vector<8x128xf32>
    %217 = vector.extract_strided_slice %13 {offsets = [15, 0, 0], sizes = [1, 8, 128], strides = [1, 1, 1]} : vector<20x8x128xf32> to vector<1x8x128xf32>
    %218 = vector.shape_cast %217 : vector<1x8x128xf32> to vector<8x128xf32>
    %219 = arith.addf %216, %218 : vector<8x128xf32>
    %cst_58 = arith.constant 5.000000e-01 : f32
    %220 = vector.broadcast %cst_58 : f32 to vector<8x128xf32>
    %221 = arith.cmpf ogt, %219, %220 : vector<8x128xf32>
    %222 = arith.extui %221 : vector<8x128xi1> to vector<8x128xi32>
    %223 = arith.sitofp %222 : vector<8x128xi32> to vector<8x128xf32>
    %224 = arith.addf %211, %223 : vector<8x128xf32>
    %cst_59 = arith.constant 2.000000e-01 : f32
    %225 = vector.broadcast %cst_59 : f32 to vector<8x128xf32>
    %226 = arith.mulf %219, %225 : vector<8x128xf32>
    %cst_60 = arith.constant 1.000000e+00 : f32
    %227 = vector.broadcast %cst_60 : f32 to vector<8x128xf32>
    %228 = arith.subf %227, %223 : vector<8x128xf32>
    %229 = arith.mulf %226, %228 : vector<8x128xf32>
    %230 = vector.extract_strided_slice %13 {offsets = [16, 0, 0], sizes = [1, 8, 128], strides = [1, 1, 1]} : vector<20x8x128xf32> to vector<1x8x128xf32>
    %231 = vector.shape_cast %230 : vector<1x8x128xf32> to vector<8x128xf32>
    %232 = arith.addf %229, %231 : vector<8x128xf32>
    %cst_61 = arith.constant 5.000000e-01 : f32
    %233 = vector.broadcast %cst_61 : f32 to vector<8x128xf32>
    %234 = arith.cmpf ogt, %232, %233 : vector<8x128xf32>
    %235 = arith.extui %234 : vector<8x128xi1> to vector<8x128xi32>
    %236 = arith.sitofp %235 : vector<8x128xi32> to vector<8x128xf32>
    %237 = arith.addf %224, %236 : vector<8x128xf32>
    %cst_62 = arith.constant 2.000000e-01 : f32
    %238 = vector.broadcast %cst_62 : f32 to vector<8x128xf32>
    %239 = arith.mulf %232, %238 : vector<8x128xf32>
    %cst_63 = arith.constant 1.000000e+00 : f32
    %240 = vector.broadcast %cst_63 : f32 to vector<8x128xf32>
    %241 = arith.subf %240, %236 : vector<8x128xf32>
    %242 = arith.mulf %239, %241 : vector<8x128xf32>
    %243 = vector.extract_strided_slice %13 {offsets = [17, 0, 0], sizes = [1, 8, 128], strides = [1, 1, 1]} : vector<20x8x128xf32> to vector<1x8x128xf32>
    %244 = vector.shape_cast %243 : vector<1x8x128xf32> to vector<8x128xf32>
    %245 = arith.addf %242, %244 : vector<8x128xf32>
    %cst_64 = arith.constant 5.000000e-01 : f32
    %246 = vector.broadcast %cst_64 : f32 to vector<8x128xf32>
    %247 = arith.cmpf ogt, %245, %246 : vector<8x128xf32>
    %248 = arith.extui %247 : vector<8x128xi1> to vector<8x128xi32>
    %249 = arith.sitofp %248 : vector<8x128xi32> to vector<8x128xf32>
    %250 = arith.addf %237, %249 : vector<8x128xf32>
    %cst_65 = arith.constant 2.000000e-01 : f32
    %251 = vector.broadcast %cst_65 : f32 to vector<8x128xf32>
    %252 = arith.mulf %245, %251 : vector<8x128xf32>
    %cst_66 = arith.constant 1.000000e+00 : f32
    %253 = vector.broadcast %cst_66 : f32 to vector<8x128xf32>
    %254 = arith.subf %253, %249 : vector<8x128xf32>
    %255 = arith.mulf %252, %254 : vector<8x128xf32>
    %256 = vector.extract_strided_slice %13 {offsets = [18, 0, 0], sizes = [1, 8, 128], strides = [1, 1, 1]} : vector<20x8x128xf32> to vector<1x8x128xf32>
    %257 = vector.shape_cast %256 : vector<1x8x128xf32> to vector<8x128xf32>
    %258 = arith.addf %255, %257 : vector<8x128xf32>
    %cst_67 = arith.constant 5.000000e-01 : f32
    %259 = vector.broadcast %cst_67 : f32 to vector<8x128xf32>
    %260 = arith.cmpf ogt, %258, %259 : vector<8x128xf32>
    %261 = arith.extui %260 : vector<8x128xi1> to vector<8x128xi32>
    %262 = arith.sitofp %261 : vector<8x128xi32> to vector<8x128xf32>
    %263 = arith.addf %250, %262 : vector<8x128xf32>
    %cst_68 = arith.constant 2.000000e-01 : f32
    %264 = vector.broadcast %cst_68 : f32 to vector<8x128xf32>
    %265 = arith.mulf %258, %264 : vector<8x128xf32>
    %cst_69 = arith.constant 1.000000e+00 : f32
    %266 = vector.broadcast %cst_69 : f32 to vector<8x128xf32>
    %267 = arith.subf %266, %262 : vector<8x128xf32>
    %268 = arith.mulf %265, %267 : vector<8x128xf32>
    %269 = vector.extract_strided_slice %13 {offsets = [19, 0, 0], sizes = [1, 8, 128], strides = [1, 1, 1]} : vector<20x8x128xf32> to vector<1x8x128xf32>
    %270 = vector.shape_cast %269 : vector<1x8x128xf32> to vector<8x128xf32>
    %271 = arith.addf %268, %270 : vector<8x128xf32>
    %cst_70 = arith.constant 5.000000e-01 : f32
    %272 = vector.broadcast %cst_70 : f32 to vector<8x128xf32>
    %273 = arith.cmpf ogt, %271, %272 : vector<8x128xf32>
    %274 = arith.extui %273 : vector<8x128xi1> to vector<8x128xi32>
    %275 = arith.sitofp %274 : vector<8x128xi32> to vector<8x128xf32>
    %276 = arith.addf %263, %275 : vector<8x128xf32>
    %cst_71 = arith.constant 5.000000e-02 : f32
    %277 = vector.broadcast %cst_71 : f32 to vector<8x128xf32>
    %278 = arith.mulf %276, %277 : vector<8x128xf32>
    %c0_72 = arith.constant 0 : index
    %c0_73 = arith.constant 0 : index
    %279 = vector.load %arg4[%c0_72, %c0_73] : memref<8x128xf32, #tpu.memory_space<vmem>>, vector<8x128xf32>
    tpu.vector_store %arg4[%c0_72, %c0_73], %278 {strides = array<i32>} : memref<8x128xf32, #tpu.memory_space<vmem>>, vector<8x128xf32>,
    return
  }
}

</mosaic_0001>

<llo_original>
// kernel: tpu_custom_call.1
$region0: #{tpu_custom_call.1}
  #allocation0 [shape = 'u32[]', space=smem, size = 0x4, offset = 0x4, fixed_abs, tag = 'smem constant byte address 0x4 - core index']
  #allocation1 [shape = 'u32[72,128]{1,0:T(1,128)}', space=vmem, size = 0x9000, scoped, tag = 'internal scratch']
  %s0 = inlined_call_operand.hbm [shape: f32[8,896], index: 0, kind: input, shape index: {}]
  %s1 = inlined_call_operand.hbm [shape: f32[20,8,896], index: 1, kind: input, shape index: {}]
  %s2 = inlined_call_operand.hbm [shape: f32[896,128], index: 2, kind: input, shape index: {}]
  %s3 = inlined_call_operand.vmem [shape: f32[1,128], index: 3, kind: input, shape index: {}]
  %s4 = inlined_call_operand.hbm [shape: f32[8,128], index: 4, kind: output, shape index: {}]
  %s5 = sld [smem:[#allocation0]]
  $region38: #{tpu_custom_call.1} parent=0
    _
  %s7 = ssub.s32 1, %s5
  %s8 = scalar_select 0, %s7, %s5
  $region1: #{tpu_custom_call.1} parent=0
    #allocation2 [shape = 'u8[28672]{0}', space=vmem, size = 0x7000, scoped, tag = 'input window, operand 0, single buffered']
    #allocation3 [shape = 's32[1]{0}', space=sflag, size = 0x4, scoped, tag = 'scoped memory for tpu_custom_call.1']
    #allocation4 [shape = 's32[1]{0}', space=sflag, size = 0x4, scoped, tag = 'scoped memory for tpu_custom_call.1']
    #allocation5 [shape = 'u8[573440]{0}', space=vmem, size = 0x8c000, scoped, tag = 'input window, operand 1, single buffered']
    #allocation6 [shape = 's32[1]{0}', space=sflag, size = 0x4, scoped, tag = 'scoped memory for tpu_custom_call.1']
    #allocation7 [shape = 'u8[458752]{0}', space=vmem, size = 0x70000, scoped, tag = 'input window, operand 2, single buffered']
    #allocation8 [shape = 'u8[4096]{0}', space=vmem, size = 0x1000, scoped, tag = 'output window, operand 0, single buffered']
    %9 = vsyncpa [#allocation3], 0
    %10 = vsyncpa [#allocation6], 0
    %11 = vsyncpa [#allocation4], 0
    // Predicated region
    $region2: #{tpu_custom_call.1} parent=1 // pred_check
      _
    $region3: #{tpu_custom_call.1} parent=1 // pred_check_branch
      %13 = sbr.rel (0) target = $region5
    $region4: #{tpu_custom_call.1} parent=1 // pred_region
      %15 = vsyncadd [#allocation3], 0
      %s17 = sshll.u32 %s0, 4
      %s18 = int_to_ptr.hbm [resolvable:$true] %s17
      %s19 = sshll.u32 [#allocation2], 4
      %s20 = int_to_ptr.vmem [resolvable:$true] %s19
      %22 = dma.hbm_to_vmem [thread:$0]  %s18, 896, %s20, [#allocation3]
    $region5: #{tpu_custom_call.1} parent=1 // pred_fallthru
      _
    // Predicated region
    $region6: #{tpu_custom_call.1} parent=1 // pred_check
      _
    $region7: #{tpu_custom_call.1} parent=1 // pred_check_branch
      %24 = sbr.rel (0) target = $region9
    $region8: #{tpu_custom_call.1} parent=1 // pred_region
      %26 = vsyncadd [#allocation6], 0
      %s27 = sshll.u32 %s1, 4
      %s28 = int_to_ptr.hbm [resolvable:$true] %s27
      %s29 = sshll.u32 [#allocation5], 4
      %s30 = int_to_ptr.vmem [resolvable:$true] %s29
      %35 = dma.hbm_to_vmem [thread:$0]  %s28, 17920, %s30, [#allocation6], 896, 896, 56
    $region9: #{tpu_custom_call.1} parent=1 // pred_fallthru
      _
    // Predicated region
    $region10: #{tpu_custom_call.1} parent=1 // pred_check
      _
    $region11: #{tpu_custom_call.1} parent=1 // pred_check_branch
      %37 = sbr.rel (0) target = $region13
    $region12: #{tpu_custom_call.1} parent=1 // pred_region
      %39 = vsyncadd [#allocation6], 0
      %s40 = sshll.u32 %s2, 4
      %s41 = int_to_ptr.hbm [resolvable:$true] %s40
      %s42 = sshll.u32 [#allocation7], 4
      %s43 = int_to_ptr.vmem [resolvable:$true] %s42
      %48 = dma.hbm_to_vmem [thread:$0]  %s41, 14336, %s43, [#allocation6], 128, 128, 8
    $region13: #{tpu_custom_call.1} parent=1 // pred_fallthru
      _
    // Predicated region
    $region14: #{tpu_custom_call.1} parent=1 // pred_check
      _
    $region15: #{tpu_custom_call.1} parent=1 // pred_check_branch
      %50 = sbr.rel (0) target = $region17
    $region16: #{tpu_custom_call.1} parent=1 // pred_region
      _
    $region17: #{tpu_custom_call.1} parent=1 // pred_fallthru
      _
    // Predicated region
    $region18: #{tpu_custom_call.1} parent=1 // pred_check
      _
    $region19: #{tpu_custom_call.1} parent=1 // pred_check_branch
      %52 = sbr.rel (0) target = $region21
    $region20: #{tpu_custom_call.1} parent=1 // pred_region
      %54 = dma.done [#allocation3], 896
    $region21: #{tpu_custom_call.1} parent=1 // pred_fallthru
      _
    // Predicated region
    $region22: #{tpu_custom_call.1} parent=1 // pred_check
      _
    $region23: #{tpu_custom_call.1} parent=1 // pred_check_branch
      %56 = sbr.rel (0) target = $region25
    $region24: #{tpu_custom_call.1} parent=1 // pred_region
      %58 = dma.done [#allocation6], 17920
    $region25: #{tpu_custom_call.1} parent=1 // pred_fallthru
      _
    // Predicated region
    $region26: #{tpu_custom_call.1} parent=1 // pred_check
      _
    $region27: #{tpu_custom_call.1} parent=1 // pred_check_branch
      %60 = sbr.rel (0) target = $region29
    $region28: #{tpu_custom_call.1} parent=1 // pred_region
      %62 = dma.done [#allocation6], 14336
    $region29: #{tpu_custom_call.1} parent=1 // pred_fallthru
      _
    %v63 = vld [vmem:[#allocation2] sm:$0xff]
    %v64 = vld [vmem:[#allocation2 + $0x8] sm:$0xff]
    %v65 = vld [vmem:[#allocation2 + $0x10] sm:$0xff]
    %v66 = vld [vmem:[#allocation2 + $0x18] sm:$0xff]
    %v67 = vld [vmem:[#allocation2 + $0x20] sm:$0xff]
    %v68 = vld [vmem:[#allocation2 + $0x28] sm:$0xff]
    %v69 = vld [vmem:[#allocation2 + $0x30] sm:$0xff]
    %v70 = vld [vmem:[#allocation5] sm:$0xff]
    %v71 = vld [vmem:[#allocation5 + $0x8] sm:$0xff]
    %v72 = vld [vmem:[#allocation5 + $0x10] sm:$0xff]
    %v73 = vld [vmem:[#allocation5 + $0x18] sm:$0xff]
    %v74 = vld [vmem:[#allocation5 + $0x20] sm:$0xff]
    %v75 = vld [vmem:[#allocation5 + $0x28] sm:$0xff]
    %v76 = vld [vmem:[#allocation5 + $0x30] sm:$0xff]
    %v77 = vld [vmem:[#allocation5 + $0x38] sm:$0xff]
    %v78 = vld [vmem:[#allocation5 + $0x40] sm:$0xff]
    %v79 = vld [vmem:[#allocation5 + $0x48] sm:$0xff]
    %v80 = vld [vmem:[#allocation5 + $0x50] sm:$0xff]
    %v81 = vld [vmem:[#allocation5 + $0x58] sm:$0xff]
    %v82 = vld [vmem:[#allocation5 + $0x60] sm:$0xff]
    %v83 = vld [vmem:[#allocation5 + $0x68] sm:$0xff]
    %v84 = vld [vmem:[#allocation5 + $0x70] sm:$0xff]
    %v85 = vld [vmem:[#allocation5 + $0x78] sm:$0xff]
    %v86 = vld [vmem:[#allocation5 + $0x80] sm:$0xff]
    %v87 = vld [vmem:[#allocation5 + $0x88] sm:$0xff]
    %v88 = vld [vmem:[#allocation5 + $0x90] sm:$0xff]
    %v89 = vld [vmem:[#allocation5 + $0x98] sm:$0xff]
    %v90 = vld [vmem:[#allocation5 + $0xa0] sm:$0xff]
    %v91 = vld [vmem:[#allocation5 + $0xa8] sm:$0xff]
    %v92 = vld [vmem:[#allocation5 + $0xb0] sm:$0xff]
    %v93 = vld [vmem:[#allocation5 + $0xb8] sm:$0xff]
    %v94 = vld [vmem:[#allocation5 + $0xc0] sm:$0xff]
    %v95 = vld [vmem:[#allocation5 + $0xc8] sm:$0xff]
    %v96 = vld [vmem:[#allocation5 + $0xd0] sm:$0xff]
    %v97 = vld [vmem:[#allocation5 + $0xd8] sm:$0xff]
    %v98 = vld [vmem:[#allocation5 + $0xe0] sm:$0xff]
    %v99 = vld [vmem:[#allocation5 + $0xe8] sm:$0xff]
    %v100 = vld [vmem:[#allocation5 + $0xf0] sm:$0xff]
    %v101 = vld [vmem:[#allocation5 + $0xf8] sm:$0xff]
    %v102 = vld [vmem:[#allocation5 + $0x100] sm:$0xff]
    %v103 = vld [vmem:[#allocation5 + $0x108] sm:$0xff]
    %v104 = vld [vmem:[#allocation5 + $0x110] sm:$0xff]
    %v105 = vld [vmem:[#allocation5 + $0x118] sm:$0xff]
    %v106 = vld [vmem:[#allocation5 + $0x120] sm:$0xff]
    %v107 = vld [vmem:[#allocation5 + $0x128] sm:$0xff]
    %v108 = vld [vmem:[#allocation5 + $0x130] sm:$0xff]
    %v109 = vld [vmem:[#allocation5 + $0x138] sm:$0xff]
    %v110 = vld [vmem:[#allocation5 + $0x140] sm:$0xff]
    %v111 = vld [vmem:[#allocation5 + $0x148] sm:$0xff]
    %v112 = vld [vmem:[#allocation5 + $0x150] sm:$0xff]
    %v113 = vld [vmem:[#allocation5 + $0x158] sm:$0xff]
    %v114 = vld [vmem:[#allocation5 + $0x160] sm:$0xff]
    %v115 = vld [vmem:[#allocation5 + $0x168] sm:$0xff]
    %v116 = vld [vmem:[#allocation5 + $0x170] sm:$0xff]
    %v117 = vld [vmem:[#allocation5 + $0x178] sm:$0xff]
    %v118 = vld [vmem:[#allocation5 + $0x180] sm:$0xff]
    %v119 = vld [vmem:[#allocation5 + $0x188] sm:$0xff]
    %v120 = vld [vmem:[#allocation5 + $0x190] sm:$0xff]
    %v121 = vld [vmem:[#allocation5 + $0x198] sm:$0xff]
    %v122 = vld [vmem:[#allocation5 + $0x1a0] sm:$0xff]
    %v123 = vld [vmem:[#allocation5 + $0x1a8] sm:$0xff]
    %v124 = vld [vmem:[#allocation5 + $0x1b0] sm:$0xff]
    %v125 = vld [vmem:[#allocation5 + $0x1b8] sm:$0xff]
    %v126 = vld [vmem:[#allocation5 + $0x1c0] sm:$0xff]
    %v127 = vld [vmem:[#allocation5 + $0x1c8] sm:$0xff]
    %v128 = vld [vmem:[#allocation5 + $0x1d0] sm:$0xff]
    %v129 = vld [vmem:[#allocation5 + $0x1d8] sm:$0xff]
    %v130 = vld [vmem:[#allocation5 + $0x1e0] sm:$0xff]
    %v131 = vld [vmem:[#allocation5 + $0x1e8] sm:$0xff]
    %v132 = vld [vmem:[#allocation5 + $0x1f0] sm:$0xff]
    %v133 = vld [vmem:[#allocation5 + $0x1f8] sm:$0xff]
    %v134 = vld [vmem:[#allocation5 + $0x200] sm:$0xff]
    %v135 = vld [vmem:[#allocation5 + $0x208] sm:$0xff]
    %v136 = vld [vmem:[#allocation5 + $0x210] sm:$0xff]
    %v137 = vld [vmem:[#allocation5 + $0x218] sm:$0xff]
    %v138 = vld [vmem:[#allocation5 + $0x220] sm:$0xff]
    %v139 = vld [vmem:[#allocation5 + $0x228] sm:$0xff]
    %v140 = vld [vmem:[#allocation5 + $0x230] sm:$0xff]
    %v141 = vld [vmem:[#allocation5 + $0x238] sm:$0xff]
    %v142 = vld [vmem:[#allocation5 + $0x240] sm:$0xff]
    %v143 = vld [vmem:[#allocation5 + $0x248] sm:$0xff]
    %v144 = vld [vmem:[#allocation5 + $0x250] sm:$0xff]
    %v145 = vld [vmem:[#allocation5 + $0x258] sm:$0xff]
    %v146 = vld [vmem:[#allocation5 + $0x260] sm:$0xff]
    %v147 = vld [vmem:[#allocation5 + $0x268] sm:$0xff]
    %v148 = vld [vmem:[#allocation5 + $0x270] sm:$0xff]
    %v149 = vld [vmem:[#allocation5 + $0x278] sm:$0xff]
    %v150 = vld [vmem:[#allocation5 + $0x280] sm:$0xff]
    %v151 = vld [vmem:[#allocation5 + $0x288] sm:$0xff]
    %v152 = vld [vmem:[#allocation5 + $0x290] sm:$0xff]
    %v153 = vld [vmem:[#allocation5 + $0x298] sm:$0xff]
    %v154 = vld [vmem:[#allocation5 + $0x2a0] sm:$0xff]
    %v155 = vld [vmem:[#allocation5 + $0x2a8] sm:$0xff]
    %v156 = vld [vmem:[#allocation5 + $0x2b0] sm:$0xff]
    %v157 = vld [vmem:[#allocation5 + $0x2b8] sm:$0xff]
    %v158 = vld [vmem:[#allocation5 + $0x2c0] sm:$0xff]
    %v159 = vld [vmem:[#allocation5 + $0x2c8] sm:$0xff]
    %v160 = vld [vmem:[#allocation5 + $0x2d0] sm:$0xff]
    %v161 = vld [vmem:[#allocation5 + $0x2d8] sm:$0xff]
    %v162 = vld [vmem:[#allocation5 + $0x2e0] sm:$0xff]
    %v163 = vld [vmem:[#allocation5 + $0x2e8] sm:$0xff]
    %v164 = vld [vmem:[#allocation5 + $0x2f0] sm:$0xff]
    %v165 = vld [vmem:[#allocation5 + $0x2f8] sm:$0xff]
    %v166 = vld [vmem:[#allocation5 + $0x300] sm:$0xff]
    %v167 = vld [vmem:[#allocation5 + $0x308] sm:$0xff]
    %v168 = vld [vmem:[#allocation5 + $0x310] sm:$0xff]
    %v169 = vld [vmem:[#allocation5 + $0x318] sm:$0xff]
    %v170 = vld [vmem:[#allocation5 + $0x320] sm:$0xff]
    %v171 = vld [vmem:[#allocation5 + $0x328] sm:$0xff]
    %v172 = vld [vmem:[#allocation5 + $0x330] sm:$0xff]
    %v173 = vld [vmem:[#allocation5 + $0x338] sm:$0xff]
    %v174 = vld [vmem:[#allocation5 + $0x340] sm:$0xff]
    %v175 = vld [vmem:[#allocation5 + $0x348] sm:$0xff]
    %v176 = vld [vmem:[#allocation5 + $0x350] sm:$0xff]
    %v177 = vld [vmem:[#allocation5 + $0x358] sm:$0xff]
    %v178 = vld [vmem:[#allocation5 + $0x360] sm:$0xff]
    %v179 = vld [vmem:[#allocation5 + $0x368] sm:$0xff]
    %v180 = vld [vmem:[#allocation5 + $0x370] sm:$0xff]
    %v181 = vld [vmem:[#allocation5 + $0x378] sm:$0xff]
    %v182 = vld [vmem:[#allocation5 + $0x380] sm:$0xff]
    %v183 = vld [vmem:[#allocation5 + $0x388] sm:$0xff]
    %v184 = vld [vmem:[#allocation5 + $0x390] sm:$0xff]
    %v185 = vld [vmem:[#allocation5 + $0x398] sm:$0xff]
    %v186 = vld [vmem:[#allocation5 + $0x3a0] sm:$0xff]
    %v187 = vld [vmem:[#allocation5 + $0x3a8] sm:$0xff]
    %v188 = vld [vmem:[#allocation5 + $0x3b0] sm:$0xff]
    %v189 = vld [vmem:[#allocation5 + $0x3b8] sm:$0xff]
    %v190 = vld [vmem:[#allocation5 + $0x3c0] sm:$0xff]
    %v191 = vld [vmem:[#allocation5 + $0x3c8] sm:$0xff]
    %v192 = vld [vmem:[#allocation5 + $0x3d0] sm:$0xff]
    %v193 = vld [vmem:[#allocation5 + $0x3d8] sm:$0xff]
    %v194 = vld [vmem:[#allocation5 + $0x3e0] sm:$0xff]
    %v195 = vld [vmem:[#allocation5 + $0x3e8] sm:$0xff]
    %v196 = vld [vmem:[#allocation5 + $0x3f0] sm:$0xff]
    %v197 = vld [vmem:[#allocation5 + $0x3f8] sm:$0xff]
    %v198 = vld [vmem:[#allocation5 + $0x400] sm:$0xff]
    %v199 = vld [vmem:[#allocation5 + $0x408] sm:$0xff]
    %v200 = vld [vmem:[#allocation5 + $0x410] sm:$0xff]
    %v201 = vld [vmem:[#allocation5 + $0x418] sm:$0xff]
    %v202 = vld [vmem:[#allocation5 + $0x420] sm:$0xff]
    %v203 = vld [vmem:[#allocation5 + $0x428] sm:$0xff]
    %v204 = vld [vmem:[#allocation5 + $0x430] sm:$0xff]
    %v205 = vld [vmem:[#allocation5 + $0x438] sm:$0xff]
    %v206 = vld [vmem:[#allocation5 + $0x440] sm:$0xff]
    %v207 = vld [vmem:[#allocation5 + $0x448] sm:$0xff]
    %v208 = vld [vmem:[#allocation5 + $0x450] sm:$0xff]
    %v209 = vld [vmem:[#allocation5 + $0x458] sm:$0xff]
    %v210 = vld [vmem:[#allocation7] sm:$0xff]
    %v211 = vld [vmem:[#allocation7 + $0x8] sm:$0xff]
    %v212 = vld [vmem:[#allocation7 + $0x10] sm:$0xff]
    %v213 = vld [vmem:[#allocation7 + $0x18] sm:$0xff]
    %v214 = vld [vmem:[#allocation7 + $0x20] sm:$0xff]
    %v215 = vld [vmem:[#allocation7 + $0x28] sm:$0xff]
    %v216 = vld [vmem:[#allocation7 + $0x30] sm:$0xff]
    %v217 = vld [vmem:[#allocation7 + $0x38] sm:$0xff]
    %v218 = vld [vmem:[#allocation7 + $0x40] sm:$0xff]
    %v219 = vld [vmem:[#allocation7 + $0x48] sm:$0xff]
    %v220 = vld [vmem:[#allocation7 + $0x50] sm:$0xff]
    %v221 = vld [vmem:[#allocation7 + $0x58] sm:$0xff]
    %v222 = vld [vmem:[#allocation7 + $0x60] sm:$0xff]
    %v223 = vld [vmem:[#allocation7 + $0x68] sm:$0xff]
    %v224 = vld [vmem:[#allocation7 + $0x70] sm:$0xff]
    %v225 = vld [vmem:[#allocation7 + $0x78] sm:$0xff]
    %v226 = vld [vmem:[#allocation7 + $0x80] sm:$0xff]
    %v227 = vld [vmem:[#allocation7 + $0x88] sm:$0xff]
    %v228 = vld [vmem:[#allocation7 + $0x90] sm:$0xff]
    %v229 = vld [vmem:[#allocation7 + $0x98] sm:$0xff]
    %v230 = vld [vmem:[#allocation7 + $0xa0] sm:$0xff]
    %v231 = vld [vmem:[#allocation7 + $0xa8] sm:$0xff]
    %v232 = vld [vmem:[#allocation7 + $0xb0] sm:$0xff]
    %v233 = vld [vmem:[#allocation7 + $0xb8] sm:$0xff]
    %v234 = vld [vmem:[#allocation7 + $0xc0] sm:$0xff]
    %v235 = vld [vmem:[#allocation7 + $0xc8] sm:$0xff]
    %v236 = vld [vmem:[#allocation7 + $0xd0] sm:$0xff]
    %v237 = vld [vmem:[#allocation7 + $0xd8] sm:$0xff]
    %v238 = vld [vmem:[#allocation7 + $0xe0] sm:$0xff]
    %v239 = vld [vmem:[#allocation7 + $0xe8] sm:$0xff]
    %v240 = vld [vmem:[#allocation7 + $0xf0] sm:$0xff]
    %v241 = vld [vmem:[#allocation7 + $0xf8] sm:$0xff]
    %v242 = vld [vmem:[#allocation7 + $0x100] sm:$0xff]
    %v243 = vld [vmem:[#allocation7 + $0x108] sm:$0xff]
    %v244 = vld [vmem:[#allocation7 + $0x110] sm:$0xff]
    %v245 = vld [vmem:[#allocation7 + $0x118] sm:$0xff]
    %v246 = vld [vmem:[#allocation7 + $0x120] sm:$0xff]
    %v247 = vld [vmem:[#allocation7 + $0x128] sm:$0xff]
    %v248 = vld [vmem:[#allocation7 + $0x130] sm:$0xff]
    %v249 = vld [vmem:[#allocation7 + $0x138] sm:$0xff]
    %v250 = vld [vmem:[#allocation7 + $0x140] sm:$0xff]
    %v251 = vld [vmem:[#allocation7 + $0x148] sm:$0xff]
    %v252 = vld [vmem:[#allocation7 + $0x150] sm:$0xff]
    %v253 = vld [vmem:[#allocation7 + $0x158] sm:$0xff]
    %v254 = vld [vmem:[#allocation7 + $0x160] sm:$0xff]
    %v255 = vld [vmem:[#allocation7 + $0x168] sm:$0xff]
    %v256 = vld [vmem:[#allocation7 + $0x170] sm:$0xff]
    %v257 = vld [vmem:[#allocation7 + $0x178] sm:$0xff]
    %v258 = vld [vmem:[#allocation7 + $0x180] sm:$0xff]
    %v259 = vld [vmem:[#allocation7 + $0x188] sm:$0xff]
    %v260 = vld [vmem:[#allocation7 + $0x190] sm:$0xff]
    %v261 = vld [vmem:[#allocation7 + $0x198] sm:$0xff]
    %v262 = vld [vmem:[#allocation7 + $0x1a0] sm:$0xff]
    %v263 = vld [vmem:[#allocation7 + $0x1a8] sm:$0xff]
    %v264 = vld [vmem:[#allocation7 + $0x1b0] sm:$0xff]
    %v265 = vld [vmem:[#allocation7 + $0x1b8] sm:$0xff]
    %v266 = vld [vmem:[#allocation7 + $0x1c0] sm:$0xff]
    %v267 = vld [vmem:[#allocation7 + $0x1c8] sm:$0xff]
    %v268 = vld [vmem:[#allocation7 + $0x1d0] sm:$0xff]
    %v269 = vld [vmem:[#allocation7 + $0x1d8] sm:$0xff]
    %v270 = vld [vmem:[#allocation7 + $0x1e0] sm:$0xff]
    %v271 = vld [vmem:[#allocation7 + $0x1e8] sm:$0xff]
    %v272 = vld [vmem:[#allocation7 + $0x1f0] sm:$0xff]
    %v273 = vld [vmem:[#allocation7 + $0x1f8] sm:$0xff]
    %v274 = vld [vmem:[#allocation7 + $0x200] sm:$0xff]
    %v275 = vld [vmem:[#allocation7 + $0x208] sm:$0xff]
    %v276 = vld [vmem:[#allocation7 + $0x210] sm:$0xff]
    %v277 = vld [vmem:[#allocation7 + $0x218] sm:$0xff]
    %v278 = vld [vmem:[#allocation7 + $0x220] sm:$0xff]
    %v279 = vld [vmem:[#allocation7 + $0x228] sm:$0xff]
    %v280 = vld [vmem:[#allocation7 + $0x230] sm:$0xff]
    %v281 = vld [vmem:[#allocation7 + $0x238] sm:$0xff]
    %v282 = vld [vmem:[#allocation7 + $0x240] sm:$0xff]
    %v283 = vld [vmem:[#allocation7 + $0x248] sm:$0xff]
    %v284 = vld [vmem:[#allocation7 + $0x250] sm:$0xff]
    %v285 = vld [vmem:[#allocation7 + $0x258] sm:$0xff]
    %v286 = vld [vmem:[#allocation7 + $0x260] sm:$0xff]
    %v287 = vld [vmem:[#allocation7 + $0x268] sm:$0xff]
    %v288 = vld [vmem:[#allocation7 + $0x270] sm:$0xff]
    %v289 = vld [vmem:[#allocation7 + $0x278] sm:$0xff]
    %v290 = vld [vmem:[#allocation7 + $0x280] sm:$0xff]
    %v291 = vld [vmem:[#allocation7 + $0x288] sm:$0xff]
    %v292 = vld [vmem:[#allocation7 + $0x290] sm:$0xff]
    %v293 = vld [vmem:[#allocation7 + $0x298] sm:$0xff]
    %v294 = vld [vmem:[#allocation7 + $0x2a0] sm:$0xff]
    %v295 = vld [vmem:[#allocation7 + $0x2a8] sm:$0xff]
    %v296 = vld [vmem:[#allocation7 + $0x2b0] sm:$0xff]
    %v297 = vld [vmem:[#allocation7 + $0x2b8] sm:$0xff]
    %v298 = vld [vmem:[#allocation7 + $0x2c0] sm:$0xff]
    %v299 = vld [vmem:[#allocation7 + $0x2c8] sm:$0xff]
    %v300 = vld [vmem:[#allocation7 + $0x2d0] sm:$0xff]
    %v301 = vld [vmem:[#allocation7 + $0x2d8] sm:$0xff]
    %v302 = vld [vmem:[#allocation7 + $0x2e0] sm:$0xff]
    %v303 = vld [vmem:[#allocation7 + $0x2e8] sm:$0xff]
    %v304 = vld [vmem:[#allocation7 + $0x2f0] sm:$0xff]
    %v305 = vld [vmem:[#allocation7 + $0x2f8] sm:$0xff]
    %v306 = vld [vmem:[#allocation7 + $0x300] sm:$0xff]
    %v307 = vld [vmem:[#allocation7 + $0x308] sm:$0xff]
    %v308 = vld [vmem:[#allocation7 + $0x310] sm:$0xff]
    %v309 = vld [vmem:[#allocation7 + $0x318] sm:$0xff]
    %v310 = vld [vmem:[#allocation7 + $0x320] sm:$0xff]
    %v311 = vld [vmem:[#allocation7 + $0x328] sm:$0xff]
    %v312 = vld [vmem:[#allocation7 + $0x330] sm:$0xff]
    %v313 = vld [vmem:[#allocation7 + $0x338] sm:$0xff]
    %v314 = vld [vmem:[#allocation7 + $0x340] sm:$0xff]
    %v315 = vld [vmem:[#allocation7 + $0x348] sm:$0xff]
    %v316 = vld [vmem:[#allocation7 + $0x350] sm:$0xff]
    %v317 = vld [vmem:[#allocation7 + $0x358] sm:$0xff]
    %v318 = vld [vmem:[#allocation7 + $0x360] sm:$0xff]
    %v319 = vld [vmem:[#allocation7 + $0x368] sm:$0xff]
    %v320 = vld [vmem:[#allocation7 + $0x370] sm:$0xff]
    %v321 = vld [vmem:[#allocation7 + $0x378] sm:$0xff]
    %v322 = vld [vmem:[%s3] sm:$0x1]
    %vm323 = vcmp.gt.f32.partialorder %v63, %v70
    %vm324 = vcmp.gt.f32.partialorder %v64, %v71
    %vm325 = vcmp.gt.f32.partialorder %v65, %v72
    %vm326 = vcmp.gt.f32.partialorder %v66, %v73
    %vm327 = vcmp.gt.f32.partialorder %v67, %v74
    %vm328 = vcmp.gt.f32.partialorder %v68, %v75
    %vm329 = vcmp.gt.f32.partialorder %v69, %v76
    %vm330 = vcmp.gt.f32.partialorder %v63, %v77
    %vm331 = vcmp.gt.f32.partialorder %v64, %v78
    %vm332 = vcmp.gt.f32.partialorder %v65, %v79
    %vm333 = vcmp.gt.f32.partialorder %v66, %v80
    %vm334 = vcmp.gt.f32.partialorder %v67, %v81
    %vm335 = vcmp.gt.f32.partialorder %v68, %v82
    %vm336 = vcmp.gt.f32.partialorder %v69, %v83
    %vm337 = vcmp.gt.f32.partialorder %v63, %v84
    %vm338 = vcmp.gt.f32.partialorder %v64, %v85
    %vm339 = vcmp.gt.f32.partialorder %v65, %v86
    %vm340 = vcmp.gt.f32.partialorder %v66, %v87
    %vm341 = vcmp.gt.f32.partialorder %v67, %v88
    %vm342 = vcmp.gt.f32.partialorder %v68, %v89
    %vm343 = vcmp.gt.f32.partialorder %v69, %v90
    %vm344 = vcmp.gt.f32.partialorder %v63, %v91
    %vm345 = vcmp.gt.f32.partialorder %v64, %v92
    %vm346 = vcmp.gt.f32.partialorder %v65, %v93
    %vm347 = vcmp.gt.f32.partialorder %v66, %v94
    %vm348 = vcmp.gt.f32.partialorder %v67, %v95
    %vm349 = vcmp.gt.f32.partialorder %v68, %v96
    %vm350 = vcmp.gt.f32.partialorder %v69, %v97
    %vm351 = vcmp.gt.f32.partialorder %v63, %v98
    %vm352 = vcmp.gt.f32.partialorder %v64, %v99
    %vm353 = vcmp.gt.f32.partialorder %v65, %v100
    %vm354 = vcmp.gt.f32.partialorder %v66, %v101
    %vm355 = vcmp.gt.f32.partialorder %v67, %v102
    %vm356 = vcmp.gt.f32.partialorder %v68, %v103
    %vm357 = vcmp.gt.f32.partialorder %v69, %v104
    %vm358 = vcmp.gt.f32.partialorder %v63, %v105
    %vm359 = vcmp.gt.f32.partialorder %v64, %v106
    %vm360 = vcmp.gt.f32.partialorder %v65, %v107
    %vm361 = vcmp.gt.f32.partialorder %v66, %v108
    %vm362 = vcmp.gt.f32.partialorder %v67, %v109
    %vm363 = vcmp.gt.f32.partialorder %v68, %v110
    %vm364 = vcmp.gt.f32.partialorder %v69, %v111
    %vm365 = vcmp.gt.f32.partialorder %v63, %v112
    %vm366 = vcmp.gt.f32.partialorder %v64, %v113
    %vm367 = vcmp.gt.f32.partialorder %v65, %v114
    %vm368 = vcmp.gt.f32.partialorder %v66, %v115
    %vm369 = vcmp.gt.f32.partialorder %v67, %v116
    %vm370 = vcmp.gt.f32.partialorder %v68, %v117
    %vm371 = vcmp.gt.f32.partialorder %v69, %v118
    %vm372 = vcmp.gt.f32.partialorder %v63, %v119
    %vm373 = vcmp.gt.f32.partialorder %v64, %v120
    %vm374 = vcmp.gt.f32.partialorder %v65, %v121
    %vm375 = vcmp.gt.f32.partialorder %v66, %v122
    %vm376 = vcmp.gt.f32.partialorder %v67, %v123
    %vm377 = vcmp.gt.f32.partialorder %v68, %v124
    %vm378 = vcmp.gt.f32.partialorder %v69, %v125
    %vm379 = vcmp.gt.f32.partialorder %v63, %v126
    %vm380 = vcmp.gt.f32.partialorder %v64, %v127
    %vm381 = vcmp.gt.f32.partialorder %v65, %v128
    %vm382 = vcmp.gt.f32.partialorder %v66, %v129
    %vm383 = vcmp.gt.f32.partialorder %v67, %v130
    %vm384 = vcmp.gt.f32.partialorder %v68, %v131
    %vm385 = vcmp.gt.f32.partialorder %v69, %v132
    %vm386 = vcmp.gt.f32.partialorder %v63, %v133
    %vm387 = vcmp.gt.f32.partialorder %v64, %v134
    %vm388 = vcmp.gt.f32.partialorder %v65, %v135
    %vm389 = vcmp.gt.f32.partialorder %v66, %v136
    %vm390 = vcmp.gt.f32.partialorder %v67, %v137
    %vm391 = vcmp.gt.f32.partialorder %v68, %v138
    %vm392 = vcmp.gt.f32.partialorder %v69, %v139
    %vm393 = vcmp.gt.f32.partialorder %v63, %v140
    %vm394 = vcmp.gt.f32.partialorder %v64, %v141
    %vm395 = vcmp.gt.f32.partialorder %v65, %v142
    %vm396 = vcmp.gt.f32.partialorder %v66, %v143
    %vm397 = vcmp.gt.f32.partialorder %v67, %v144
    %vm398 = vcmp.gt.f32.partialorder %v68, %v145
    %vm399 = vcmp.gt.f32.partialorder %v69, %v146
    %vm400 = vcmp.gt.f32.partialorder %v63, %v147
    %vm401 = vcmp.gt.f32.partialorder %v64, %v148
    %vm402 = vcmp.gt.f32.partialorder %v65, %v149
    %vm403 = vcmp.gt.f32.partialorder %v66, %v150
    %vm404 = vcmp.gt.f32.partialorder %v67, %v151
    %vm405 = vcmp.gt.f32.partialorder %v68, %v152
    %vm406 = vcmp.gt.f32.partialorder %v69, %v153
    %vm407 = vcmp.gt.f32.partialorder %v63, %v154
    %vm408 = vcmp.gt.f32.partialorder %v64, %v155
    %vm409 = vcmp.gt.f32.partialorder %v65, %v156
    %vm410 = vcmp.gt.f32.partialorder %v66, %v157
    %vm411 = vcmp.gt.f32.partialorder %v67, %v158
    %vm412 = vcmp.gt.f32.partialorder %v68, %v159
    %vm413 = vcmp.gt.f32.partialorder %v69, %v160
    %vm414 = vcmp.gt.f32.partialorder %v63, %v161
    %vm415 = vcmp.gt.f32.partialorder %v64, %v162
    %vm416 = vcmp.gt.f32.partialorder %v65, %v163
    %vm417 = vcmp.gt.f32.partialorder %v66, %v164
    %vm418 = vcmp.gt.f32.partialorder %v67, %v165
    %vm419 = vcmp.gt.f32.partialorder %v68, %v166
    %vm420 = vcmp.gt.f32.partialorder %v69, %v167
    %vm421 = vcmp.gt.f32.partialorder %v63, %v168
    %vm422 = vcmp.gt.f32.partialorder %v64, %v169
    %vm423 = vcmp.gt.f32.partialorder %v65, %v170
    %vm424 = vcmp.gt.f32.partialorder %v66, %v171
    %vm425 = vcmp.gt.f32.partialorder %v67, %v172
    %vm426 = vcmp.gt.f32.partialorder %v68, %v173
    %vm427 = vcmp.gt.f32.partialorder %v69, %v174
    %vm428 = vcmp.gt.f32.partialorder %v63, %v175
    %vm429 = vcmp.gt.f32.partialorder %v64, %v176
    %vm430 = vcmp.gt.f32.partialorder %v65, %v177
    %vm431 = vcmp.gt.f32.partialorder %v66, %v178
    %vm432 = vcmp.gt.f32.partialorder %v67, %v179
    %vm433 = vcmp.gt.f32.partialorder %v68, %v180
    %vm434 = vcmp.gt.f32.partialorder %v69, %v181
    %vm435 = vcmp.gt.f32.partialorder %v63, %v182
    %vm436 = vcmp.gt.f32.partialorder %v64, %v183
    %vm437 = vcmp.gt.f32.partialorder %v65, %v184
    %vm438 = vcmp.gt.f32.partialorder %v66, %v185
    %vm439 = vcmp.gt.f32.partialorder %v67, %v186
    %vm440 = vcmp.gt.f32.partialorder %v68, %v187
    %vm441 = vcmp.gt.f32.partialorder %v69, %v188
    %vm442 = vcmp.gt.f32.partialorder %v63, %v189
    %vm443 = vcmp.gt.f32.partialorder %v64, %v190
    %vm444 = vcmp.gt.f32.partialorder %v65, %v191
    %vm445 = vcmp.gt.f32.partialorder %v66, %v192
    %vm446 = vcmp.gt.f32.partialorder %v67, %v193
    %vm447 = vcmp.gt.f32.partialorder %v68, %v194
    %vm448 = vcmp.gt.f32.partialorder %v69, %v195
    %vm449 = vcmp.gt.f32.partialorder %v63, %v196
    %vm450 = vcmp.gt.f32.partialorder %v64, %v197
    %vm451 = vcmp.gt.f32.partialorder %v65, %v198
    %vm452 = vcmp.gt.f32.partialorder %v66, %v199
    %vm453 = vcmp.gt.f32.partialorder %v67, %v200
    %vm454 = vcmp.gt.f32.partialorder %v68, %v201
    %vm455 = vcmp.gt.f32.partialorder %v69, %v202
    %vm456 = vcmp.gt.f32.partialorder %v63, %v203
    %vm457 = vcmp.gt.f32.partialorder %v64, %v204
    %vm458 = vcmp.gt.f32.partialorder %v65, %v205
    %vm459 = vcmp.gt.f32.partialorder %v66, %v206
    %vm460 = vcmp.gt.f32.partialorder %v67, %v207
    %vm461 = vcmp.gt.f32.partialorder %v68, %v208
    %vm462 = vcmp.gt.f32.partialorder %v69, %v209
    %v463 = vsel %vm323, 1, 0
    %v464 = vsel %vm324, 1, 0
    %v465 = vsel %vm325, 1, 0
    %v466 = vsel %vm326, 1, 0
    %v467 = vsel %vm327, 1, 0
    %v468 = vsel %vm328, 1, 0
    %v469 = vsel %vm329, 1, 0
    %v470 = vsel %vm330, 1, 0
    %v471 = vsel %vm331, 1, 0
    %v472 = vsel %vm332, 1, 0
    %v473 = vsel %vm333, 1, 0
    %v474 = vsel %vm334, 1, 0
    %v475 = vsel %vm335, 1, 0
    %v476 = vsel %vm336, 1, 0
    %v477 = vsel %vm337, 1, 0
    %v478 = vsel %vm338, 1, 0
    %v479 = vsel %vm339, 1, 0
    %v480 = vsel %vm340, 1, 0
    %v481 = vsel %vm341, 1, 0
    %v482 = vsel %vm342, 1, 0
    %v483 = vsel %vm343, 1, 0
    %v484 = vsel %vm344, 1, 0
    %v485 = vsel %vm345, 1, 0
    %v486 = vsel %vm346, 1, 0
    %v487 = vsel %vm347, 1, 0
    %v488 = vsel %vm348, 1, 0
    %v489 = vsel %vm349, 1, 0
    %v490 = vsel %vm350, 1, 0
    %v491 = vsel %vm351, 1, 0
    %v492 = vsel %vm352, 1, 0
    %v493 = vsel %vm353, 1, 0
    %v494 = vsel %vm354, 1, 0
    %v495 = vsel %vm355, 1, 0
    %v496 = vsel %vm356, 1, 0
    %v497 = vsel %vm357, 1, 0
    %v498 = vsel %vm358, 1, 0
    %v499 = vsel %vm359, 1, 0
    %v500 = vsel %vm360, 1, 0
    %v501 = vsel %vm361, 1, 0
    %v502 = vsel %vm362, 1, 0
    %v503 = vsel %vm363, 1, 0
    %v504 = vsel %vm364, 1, 0
    %v505 = vsel %vm365, 1, 0
    %v506 = vsel %vm366, 1, 0
    %v507 = vsel %vm367, 1, 0
    %v508 = vsel %vm368, 1, 0
    %v509 = vsel %vm369, 1, 0
    %v510 = vsel %vm370, 1, 0
    %v511 = vsel %vm371, 1, 0
    %v512 = vsel %vm372, 1, 0
    %v513 = vsel %vm373, 1, 0
    %v514 = vsel %vm374, 1, 0
    %v515 = vsel %vm375, 1, 0
    %v516 = vsel %vm376, 1, 0
    %v517 = vsel %vm377, 1, 0
    %v518 = vsel %vm378, 1, 0
    %v519 = vsel %vm379, 1, 0
    %v520 = vsel %vm380, 1, 0
    %v521 = vsel %vm381, 1, 0
    %v522 = vsel %vm382, 1, 0
    %v523 = vsel %vm383, 1, 0
    %v524 = vsel %vm384, 1, 0
    %v525 = vsel %vm385, 1, 0
    %v526 = vsel %vm386, 1, 0
    %v527 = vsel %vm387, 1, 0
    %v528 = vsel %vm388, 1, 0
    %v529 = vsel %vm389, 1, 0
    %v530 = vsel %vm390, 1, 0
    %v531 = vsel %vm391, 1, 0
    %v532 = vsel %vm392, 1, 0
    %v533 = vsel %vm393, 1, 0
    %v534 = vsel %vm394, 1, 0
    %v535 = vsel %vm395, 1, 0
    %v536 = vsel %vm396, 1, 0
    %v537 = vsel %vm397, 1, 0
    %v538 = vsel %vm398, 1, 0
    %v539 = vsel %vm399, 1, 0
    %v540 = vsel %vm400, 1, 0
    %v541 = vsel %vm401, 1, 0
    %v542 = vsel %vm402, 1, 0
    %v543 = vsel %vm403, 1, 0
    %v544 = vsel %vm404, 1, 0
    %v545 = vsel %vm405, 1, 0
    %v546 = vsel %vm406, 1, 0
    %v547 = vsel %vm407, 1, 0
    %v548 = vsel %vm408, 1, 0
    %v549 = vsel %vm409, 1, 0
    %v550 = vsel %vm410, 1, 0
    %v551 = vsel %vm411, 1, 0
    %v552 = vsel %vm412, 1, 0
    %v553 = vsel %vm413, 1, 0
    %v554 = vsel %vm414, 1, 0
    %v555 = vsel %vm415, 1, 0
    %v556 = vsel %vm416, 1, 0
    %v557 = vsel %vm417, 1, 0
    %v558 = vsel %vm418, 1, 0
    %v559 = vsel %vm419, 1, 0
    %v560 = vsel %vm420, 1, 0
    %v561 = vsel %vm421, 1, 0
    %v562 = vsel %vm422, 1, 0
    %v563 = vsel %vm423, 1, 0
    %v564 = vsel %vm424, 1, 0
    %v565 = vsel %vm425, 1, 0
    %v566 = vsel %vm426, 1, 0
    %v567 = vsel %vm427, 1, 0
    %v568 = vsel %vm428, 1, 0
    %v569 = vsel %vm429, 1, 0
    %v570 = vsel %vm430, 1, 0
    %v571 = vsel %vm431, 1, 0
    %v572 = vsel %vm432, 1, 0
    %v573 = vsel %vm433, 1, 0
    %v574 = vsel %vm434, 1, 0
    %v575 = vsel %vm435, 1, 0
    %v576 = vsel %vm436, 1, 0
    %v577 = vsel %vm437, 1, 0
    %v578 = vsel %vm438, 1, 0
    %v579 = vsel %vm439, 1, 0
    %v580 = vsel %vm440, 1, 0
    %v581 = vsel %vm441, 1, 0
    %v582 = vsel %vm442, 1, 0
    %v583 = vsel %vm443, 1, 0
    %v584 = vsel %vm444, 1, 0
    %v585 = vsel %vm445, 1, 0
    %v586 = vsel %vm446, 1, 0
    %v587 = vsel %vm447, 1, 0
    %v588 = vsel %vm448, 1, 0
    %v589 = vsel %vm449, 1, 0
    %v590 = vsel %vm450, 1, 0
    %v591 = vsel %vm451, 1, 0
    %v592 = vsel %vm452, 1, 0
    %v593 = vsel %vm453, 1, 0
    %v594 = vsel %vm454, 1, 0
    %v595 = vsel %vm455, 1, 0
    %v596 = vsel %vm456, 1, 0
    %v597 = vsel %vm457, 1, 0
    %v598 = vsel %vm458, 1, 0
    %v599 = vsel %vm459, 1, 0
    %v600 = vsel %vm460, 1, 0
    %v601 = vsel %vm461, 1, 0
    %v602 = vsel %vm462, 1, 0
    %v603 = vcvt.s32.f32 %v463
    %v604 = vcvt.s32.f32 %v464
    %v605 = vcvt.s32.f32 %v465
    %v606 = vcvt.s32.f32 %v466
    %v607 = vcvt.s32.f32 %v467
    %v608 = vcvt.s32.f32 %v468
    %v609 = vcvt.s32.f32 %v469
    %v610 = vcvt.s32.f32 %v470
    %v611 = vcvt.s32.f32 %v471
    %v612 = vcvt.s32.f32 %v472
    %v613 = vcvt.s32.f32 %v473
    %v614 = vcvt.s32.f32 %v474
    %v615 = vcvt.s32.f32 %v475
    %v616 = vcvt.s32.f32 %v476
    %v617 = vcvt.s32.f32 %v477
    %v618 = vcvt.s32.f32 %v478
    %v619 = vcvt.s32.f32 %v479
    %v620 = vcvt.s32.f32 %v480
    %v621 = vcvt.s32.f32 %v481
    %v622 = vcvt.s32.f32 %v482
    %v623 = vcvt.s32.f32 %v483
    %v624 = vcvt.s32.f32 %v484
    %v625 = vcvt.s32.f32 %v485
    %v626 = vcvt.s32.f32 %v486
    %v627 = vcvt.s32.f32 %v487
    %v628 = vcvt.s32.f32 %v488
    %v629 = vcvt.s32.f32 %v489
    %v630 = vcvt.s32.f32 %v490
    %v631 = vcvt.s32.f32 %v491
    %v632 = vcvt.s32.f32 %v492
    %v633 = vcvt.s32.f32 %v493
    %v634 = vcvt.s32.f32 %v494
    %v635 = vcvt.s32.f32 %v495
    %v636 = vcvt.s32.f32 %v496
    %v637 = vcvt.s32.f32 %v497
    %v638 = vcvt.s32.f32 %v498
    %v639 = vcvt.s32.f32 %v499
    %v640 = vcvt.s32.f32 %v500
    %v641 = vcvt.s32.f32 %v501
    %v642 = vcvt.s32.f32 %v502
    %v643 = vcvt.s32.f32 %v503
    %v644 = vcvt.s32.f32 %v504
    %v645 = vcvt.s32.f32 %v505
    %v646 = vcvt.s32.f32 %v506
    %v647 = vcvt.s32.f32 %v507
    %v648 = vcvt.s32.f32 %v508
    %v649 = vcvt.s32.f32 %v509
    %v650 = vcvt.s32.f32 %v510
    %v651 = vcvt.s32.f32 %v511
    %v652 = vcvt.s32.f32 %v512
    %v653 = vcvt.s32.f32 %v513
    %v654 = vcvt.s32.f32 %v514
    %v655 = vcvt.s32.f32 %v515
    %v656 = vcvt.s32.f32 %v516
    %v657 = vcvt.s32.f32 %v517
    %v658 = vcvt.s32.f32 %v518
    %v659 = vcvt.s32.f32 %v519
    %v660 = vcvt.s32.f32 %v520
    %v661 = vcvt.s32.f32 %v521
    %v662 = vcvt.s32.f32 %v522
    %v663 = vcvt.s32.f32 %v523
    %v664 = vcvt.s32.f32 %v524
    %v665 = vcvt.s32.f32 %v525
    %v666 = vcvt.s32.f32 %v526
    %v667 = vcvt.s32.f32 %v527
    %v668 = vcvt.s32.f32 %v528
    %v669 = vcvt.s32.f32 %v529
    %v670 = vcvt.s32.f32 %v530
    %v671 = vcvt.s32.f32 %v531
    %v672 = vcvt.s32.f32 %v532
    %v673 = vcvt.s32.f32 %v533
    %v674 = vcvt.s32.f32 %v534
    %v675 = vcvt.s32.f32 %v535
    %v676 = vcvt.s32.f32 %v536
    %v677 = vcvt.s32.f32 %v537
    %v678 = vcvt.s32.f32 %v538
    %v679 = vcvt.s32.f32 %v539
    %v680 = vcvt.s32.f32 %v540
    %v681 = vcvt.s32.f32 %v541
    %v682 = vcvt.s32.f32 %v542
    %v683 = vcvt.s32.f32 %v543
    %v684 = vcvt.s32.f32 %v544
    %v685 = vcvt.s32.f32 %v545
    %v686 = vcvt.s32.f32 %v546
    %v687 = vcvt.s32.f32 %v547
    %v688 = vcvt.s32.f32 %v548
    %v689 = vcvt.s32.f32 %v549
    %v690 = vcvt.s32.f32 %v550
    %v691 = vcvt.s32.f32 %v551
    %v692 = vcvt.s32.f32 %v552
    %v693 = vcvt.s32.f32 %v553
    %v694 = vcvt.s32.f32 %v554
    %v695 = vcvt.s32.f32 %v555
    %v696 = vcvt.s32.f32 %v556
    %v697 = vcvt.s32.f32 %v557
    %v698 = vcvt.s32.f32 %v558
    %v699 = vcvt.s32.f32 %v559
    %v700 = vcvt.s32.f32 %v560
    %v701 = vcvt.s32.f32 %v561
    %v702 = vcvt.s32.f32 %v562
    %v703 = vcvt.s32.f32 %v563
    %v704 = vcvt.s32.f32 %v564
    %v705 = vcvt.s32.f32 %v565
    %v706 = vcvt.s32.f32 %v566
    %v707 = vcvt.s32.f32 %v567
    %v708 = vcvt.s32.f32 %v568
    %v709 = vcvt.s32.f32 %v569
    %v710 = vcvt.s32.f32 %v570
    %v711 = vcvt.s32.f32 %v571
    %v712 = vcvt.s32.f32 %v572
    %v713 = vcvt.s32.f32 %v573
    %v714 = vcvt.s32.f32 %v574
    %v715 = vcvt.s32.f32 %v575
    %v716 = vcvt.s32.f32 %v576
    %v717 = vcvt.s32.f32 %v577
    %v718 = vcvt.s32.f32 %v578
    %v719 = vcvt.s32.f32 %v579
    %v720 = vcvt.s32.f32 %v580
    %v721 = vcvt.s32.f32 %v581
    %v722 = vcvt.s32.f32 %v582
    %v723 = vcvt.s32.f32 %v583
    %v724 = vcvt.s32.f32 %v584
    %v725 = vcvt.s32.f32 %v585
    %v726 = vcvt.s32.f32 %v586
    %v727 = vcvt.s32.f32 %v587
    %v728 = vcvt.s32.f32 %v588
    %v729 = vcvt.s32.f32 %v589
    %v730 = vcvt.s32.f32 %v590
    %v731 = vcvt.s32.f32 %v591
    %v732 = vcvt.s32.f32 %v592
    %v733 = vcvt.s32.f32 %v593
    %v734 = vcvt.s32.f32 %v594
    %v735 = vcvt.s32.f32 %v595
    %v736 = vcvt.s32.f32 %v596
    %v737 = vcvt.s32.f32 %v597
    %v738 = vcvt.s32.f32 %v598
    %v739 = vcvt.s32.f32 %v599
    %v740 = vcvt.s32.f32 %v600
    %v741 = vcvt.s32.f32 %v601
    %v742 = vcvt.s32.f32 %v602
    %v744 = vperm.slane %v322, 0
    %746 = vmatpush.msra.mxu0 %v225
    %747 = vmatpush.msra.mxu0 %v224
    %748 = vmatpush.msra.mxu0 %v223
    %749 = vmatpush.msra.mxu0 %v222
    %750 = vmatpush.msra.mxu0 %v221
    %751 = vmatpush.msra.mxu0 %v220
    %752 = vmatpush.msra.mxu0 %v219
    %753 = vmatpush.msra.mxu0 %v218
    %754 = vmatpush.msra.mxu0 %v217
    %755 = vmatpush.msra.mxu0 %v216
    %756 = vmatpush.msra.mxu0 %v215
    %757 = vmatpush.msra.mxu0 %v214
    %758 = vmatpush.msra.mxu0 %v213
    %759 = vmatpush.msra.mxu0 %v212
    %760 = vmatpush.msra.mxu0 %v211
    %761 = vmatpush.msra.mxu0 %v210
    %762 = vmatmul.f32.gmra.mxu0 %v603
    %v763 = vpop.f32.mrf.mxu0
    %v764 = vadd.f32 %v744, %v763
    %765 = vmatmul.f32.gmra.mxu0 %v610
    %v766 = vpop.f32.mrf.mxu0
    %v767 = vadd.f32 %v744, %v766
    %768 = vmatmul.f32.gmra.mxu0 %v617
    %v769 = vpop.f32.mrf.mxu0
    %v770 = vadd.f32 %v744, %v769
    %771 = vmatmul.f32.gmra.mxu0 %v624
    %v772 = vpop.f32.mrf.mxu0
    %v773 = vadd.f32 %v744, %v772
    %774 = vmatmul.f32.gmra.mxu0 %v631
    %v775 = vpop.f32.mrf.mxu0
    %v776 = vadd.f32 %v744, %v775
    %777 = vmatmul.f32.gmra.mxu0 %v638
    %v778 = vpop.f32.mrf.mxu0
    %v779 = vadd.f32 %v744, %v778
    %780 = vmatmul.f32.gmra.mxu0 %v645
    %v781 = vpop.f32.mrf.mxu0
    %v782 = vadd.f32 %v744, %v781
    %783 = vmatmul.f32.gmra.mxu0 %v652
    %v784 = vpop.f32.mrf.mxu0
    %v785 = vadd.f32 %v744, %v784
    %786 = vmatmul.f32.gmra.mxu0 %v659
    %v787 = vpop.f32.mrf.mxu0
    %v788 = vadd.f32 %v744, %v787
    %789 = vmatmul.f32.gmra.mxu0 %v666
    %v790 = vpop.f32.mrf.mxu0
    %v791 = vadd.f32 %v744, %v790
    %792 = vmatmul.f32.gmra.mxu0 %v673
    %v793 = vpop.f32.mrf.mxu0
    %v794 = vadd.f32 %v744, %v793
    %795 = vmatmul.f32.gmra.mxu0 %v680
    %v796 = vpop.f32.mrf.mxu0
    %v797 = vadd.f32 %v744, %v796
    %798 = vmatmul.f32.gmra.mxu0 %v687
    %v799 = vpop.f32.mrf.mxu0
    %v800 = vadd.f32 %v744, %v799
    %801 = vmatmul.f32.gmra.mxu0 %v694
    %v802 = vpop.f32.mrf.mxu0
    %v803 = vadd.f32 %v744, %v802
    %804 = vmatmul.f32.gmra.mxu0 %v701
    %v805 = vpop.f32.mrf.mxu0
    %v806 = vadd.f32 %v744, %v805
    %807 = vmatmul.f32.gmra.mxu0 %v708
    %v808 = vpop.f32.mrf.mxu0
    %v809 = vadd.f32 %v744, %v808
    %810 = vmatmul.f32.gmra.mxu0 %v715
    %v811 = vpop.f32.mrf.mxu0
    %v812 = vadd.f32 %v744, %v811
    %813 = vmatmul.f32.gmra.mxu0 %v722
    %v814 = vpop.f32.mrf.mxu0
    %v815 = vadd.f32 %v744, %v814
    %816 = vmatmul.f32.gmra.mxu0 %v729
    %v817 = vpop.f32.mrf.mxu0
    %v818 = vadd.f32 %v744, %v817
    %819 = vmatmul.f32.gmra.mxu0 %v736
    %v820 = vpop.f32.mrf.mxu0
    %v821 = vadd.f32 %v744, %v820
    %822 = vdwg.mxu0
    %823 = vmatpush.msra.mxu0 %v241
    %824 = vmatpush.msra.mxu0 %v240
    %825 = vmatpush.msra.mxu0 %v239
    %826 = vmatpush.msra.mxu0 %v238
    %827 = vmatpush.msra.mxu0 %v237
    %828 = vmatpush.msra.mxu0 %v236
    %829 = vmatpush.msra.mxu0 %v235
    %830 = vmatpush.msra.mxu0 %v234
    %831 = vmatpush.msra.mxu0 %v233
    %832 = vmatpush.msra.mxu0 %v232
    %833 = vmatpush.msra.mxu0 %v231
    %834 = vmatpush.msra.mxu0 %v230
    %835 = vmatpush.msra.mxu0 %v229
    %836 = vmatpush.msra.mxu0 %v228
    %837 = vmatpush.msra.mxu0 %v227
    %838 = vmatpush.msra.mxu0 %v226
    %839 = vmatmul.f32.gmra.mxu0 %v604
    %v840 = vpop.f32.mrf.mxu0
    %v841 = vadd.f32 %v764, %v840
    %842 = vmatmul.f32.gmra.mxu0 %v611
    %v843 = vpop.f32.mrf.mxu0
    %v844 = vadd.f32 %v767, %v843
    %845 = vmatmul.f32.gmra.mxu0 %v618
    %v846 = vpop.f32.mrf.mxu0
    %v847 = vadd.f32 %v770, %v846
    %848 = vmatmul.f32.gmra.mxu0 %v625
    %v849 = vpop.f32.mrf.mxu0
    %v850 = vadd.f32 %v773, %v849
    %851 = vmatmul.f32.gmra.mxu0 %v632
    %v852 = vpop.f32.mrf.mxu0
    %v853 = vadd.f32 %v776, %v852
    %854 = vmatmul.f32.gmra.mxu0 %v639
    %v855 = vpop.f32.mrf.mxu0
    %v856 = vadd.f32 %v779, %v855
    %857 = vmatmul.f32.gmra.mxu0 %v646
    %v858 = vpop.f32.mrf.mxu0
    %v859 = vadd.f32 %v782, %v858
    %860 = vmatmul.f32.gmra.mxu0 %v653
    %v861 = vpop.f32.mrf.mxu0
    %v862 = vadd.f32 %v785, %v861
    %863 = vmatmul.f32.gmra.mxu0 %v660
    %v864 = vpop.f32.mrf.mxu0
    %v865 = vadd.f32 %v788, %v864
    %866 = vmatmul.f32.gmra.mxu0 %v667
    %v867 = vpop.f32.mrf.mxu0
    %v868 = vadd.f32 %v791, %v867
    %869 = vmatmul.f32.gmra.mxu0 %v674
    %v870 = vpop.f32.mrf.mxu0
    %v871 = vadd.f32 %v794, %v870
    %872 = vmatmul.f32.gmra.mxu0 %v681
    %v873 = vpop.f32.mrf.mxu0
    %v874 = vadd.f32 %v797, %v873
    %875 = vmatmul.f32.gmra.mxu0 %v688
    %v876 = vpop.f32.mrf.mxu0
    %v877 = vadd.f32 %v800, %v876
    %878 = vmatmul.f32.gmra.mxu0 %v695
    %v879 = vpop.f32.mrf.mxu0
    %v880 = vadd.f32 %v803, %v879
    %881 = vmatmul.f32.gmra.mxu0 %v702
    %v882 = vpop.f32.mrf.mxu0
    %v883 = vadd.f32 %v806, %v882
    %884 = vmatmul.f32.gmra.mxu0 %v709
    %v885 = vpop.f32.mrf.mxu0
    %v886 = vadd.f32 %v809, %v885
    %887 = vmatmul.f32.gmra.mxu0 %v716
    %v888 = vpop.f32.mrf.mxu0
    %v889 = vadd.f32 %v812, %v888
    %890 = vmatmul.f32.gmra.mxu0 %v723
    %v891 = vpop.f32.mrf.mxu0
    %v892 = vadd.f32 %v815, %v891
    %893 = vmatmul.f32.gmra.mxu0 %v730
    %v894 = vpop.f32.mrf.mxu0
    %v895 = vadd.f32 %v818, %v894
    %896 = vmatmul.f32.gmra.mxu0 %v737
    %v897 = vpop.f32.mrf.mxu0
    %v898 = vadd.f32 %v821, %v897
    %899 = vdwg.mxu0
    %900 = vmatpush.msra.mxu0 %v257
    %901 = vmatpush.msra.mxu0 %v256
    %902 = vmatpush.msra.mxu0 %v255
    %903 = vmatpush.msra.mxu0 %v254
    %904 = vmatpush.msra.mxu0 %v253
    %905 = vmatpush.msra.mxu0 %v252
    %906 = vmatpush.msra.mxu0 %v251
    %907 = vmatpush.msra.mxu0 %v250
    %908 = vmatpush.msra.mxu0 %v249
    %909 = vmatpush.msra.mxu0 %v248
    %910 = vmatpush.msra.mxu0 %v247
    %911 = vmatpush.msra.mxu0 %v246
    %912 = vmatpush.msra.mxu0 %v245
    %913 = vmatpush.msra.mxu0 %v244
    %914 = vmatpush.msra.mxu0 %v243
    %915 = vmatpush.msra.mxu0 %v242
    %916 = vmatmul.f32.gmra.mxu0 %v605
    %v917 = vpop.f32.mrf.mxu0
    %v918 = vadd.f32 %v841, %v917
    %919 = vmatmul.f32.gmra.mxu0 %v612
    %v920 = vpop.f32.mrf.mxu0
    %v921 = vadd.f32 %v844, %v920
    %922 = vmatmul.f32.gmra.mxu0 %v619
    %v923 = vpop.f32.mrf.mxu0
    %v924 = vadd.f32 %v847, %v923
    %925 = vmatmul.f32.gmra.mxu0 %v626
    %v926 = vpop.f32.mrf.mxu0
    %v927 = vadd.f32 %v850, %v926
    %928 = vmatmul.f32.gmra.mxu0 %v633
    %v929 = vpop.f32.mrf.mxu0
    %v930 = vadd.f32 %v853, %v929
    %931 = vmatmul.f32.gmra.mxu0 %v640
    %v932 = vpop.f32.mrf.mxu0
    %v933 = vadd.f32 %v856, %v932
    %934 = vmatmul.f32.gmra.mxu0 %v647
    %v935 = vpop.f32.mrf.mxu0
    %v936 = vadd.f32 %v859, %v935
    %937 = vmatmul.f32.gmra.mxu0 %v654
    %v938 = vpop.f32.mrf.mxu0
    %v939 = vadd.f32 %v862, %v938
    %940 = vmatmul.f32.gmra.mxu0 %v661
    %v941 = vpop.f32.mrf.mxu0
    %v942 = vadd.f32 %v865, %v941
    %943 = vmatmul.f32.gmra.mxu0 %v668
    %v944 = vpop.f32.mrf.mxu0
    %v945 = vadd.f32 %v868, %v944
    %946 = vmatmul.f32.gmra.mxu0 %v675
    %v947 = vpop.f32.mrf.mxu0
    %v948 = vadd.f32 %v871, %v947
    %949 = vmatmul.f32.gmra.mxu0 %v682
    %v950 = vpop.f32.mrf.mxu0
    %v951 = vadd.f32 %v874, %v950
    %952 = vmatmul.f32.gmra.mxu0 %v689
    %v953 = vpop.f32.mrf.mxu0
    %v954 = vadd.f32 %v877, %v953
    %955 = vmatmul.f32.gmra.mxu0 %v696
    %v956 = vpop.f32.mrf.mxu0
    %v957 = vadd.f32 %v880, %v956
    %958 = vmatmul.f32.gmra.mxu0 %v703
    %v959 = vpop.f32.mrf.mxu0
    %v960 = vadd.f32 %v883, %v959
    %961 = vmatmul.f32.gmra.mxu0 %v710
    %v962 = vpop.f32.mrf.mxu0
    %v963 = vadd.f32 %v886, %v962
    %964 = vmatmul.f32.gmra.mxu0 %v717
    %v965 = vpop.f32.mrf.mxu0
    %v966 = vadd.f32 %v889, %v965
    %967 = vmatmul.f32.gmra.mxu0 %v724
    %v968 = vpop.f32.mrf.mxu0
    %v969 = vadd.f32 %v892, %v968
    %970 = vmatmul.f32.gmra.mxu0 %v731
    %v971 = vpop.f32.mrf.mxu0
    %v972 = vadd.f32 %v895, %v971
    %973 = vmatmul.f32.gmra.mxu0 %v738
    %v974 = vpop.f32.mrf.mxu0
    %v975 = vadd.f32 %v898, %v974
    %976 = vdwg.mxu0
    %977 = vmatpush.msra.mxu0 %v273
    %978 = vmatpush.msra.mxu0 %v272
    %979 = vmatpush.msra.mxu0 %v271
    %980 = vmatpush.msra.mxu0 %v270
    %981 = vmatpush.msra.mxu0 %v269
    %982 = vmatpush.msra.mxu0 %v268
    %983 = vmatpush.msra.mxu0 %v267
    %984 = vmatpush.msra.mxu0 %v266
    %985 = vmatpush.msra.mxu0 %v265
    %986 = vmatpush.msra.mxu0 %v264
    %987 = vmatpush.msra.mxu0 %v263
    %988 = vmatpush.msra.mxu0 %v262
    %989 = vmatpush.msra.mxu0 %v261
    %990 = vmatpush.msra.mxu0 %v260
    %991 = vmatpush.msra.mxu0 %v259
    %992 = vmatpush.msra.mxu0 %v258
    %993 = vmatmul.f32.gmra.mxu0 %v606
    %v994 = vpop.f32.mrf.mxu0
    %v995 = vadd.f32 %v918, %v994
    %996 = vmatmul.f32.gmra.mxu0 %v613
    %v997 = vpop.f32.mrf.mxu0
    %v998 = vadd.f32 %v921, %v997
    %999 = vmatmul.f32.gmra.mxu0 %v620
    %v1000 = vpop.f32.mrf.mxu0
    %v1001 = vadd.f32 %v924, %v1000
    %1002 = vmatmul.f32.gmra.mxu0 %v627
    %v1003 = vpop.f32.mrf.mxu0
    %v1004 = vadd.f32 %v927, %v1003
    %1005 = vmatmul.f32.gmra.mxu0 %v634
    %v1006 = vpop.f32.mrf.mxu0
    %v1007 = vadd.f32 %v930, %v1006
    %1008 = vmatmul.f32.gmra.mxu0 %v641
    %v1009 = vpop.f32.mrf.mxu0
    %v1010 = vadd.f32 %v933, %v1009
    %1011 = vmatmul.f32.gmra.mxu0 %v648
    %v1012 = vpop.f32.mrf.mxu0
    %v1013 = vadd.f32 %v936, %v1012
    %1014 = vmatmul.f32.gmra.mxu0 %v655
    %v1015 = vpop.f32.mrf.mxu0
    %v1016 = vadd.f32 %v939, %v1015
    %1017 = vmatmul.f32.gmra.mxu0 %v662
    %v1018 = vpop.f32.mrf.mxu0
    %v1019 = vadd.f32 %v942, %v1018
    %1020 = vmatmul.f32.gmra.mxu0 %v669
    %v1021 = vpop.f32.mrf.mxu0
    %v1022 = vadd.f32 %v945, %v1021
    %1023 = vmatmul.f32.gmra.mxu0 %v676
    %v1024 = vpop.f32.mrf.mxu0
    %v1025 = vadd.f32 %v948, %v1024
    %1026 = vmatmul.f32.gmra.mxu0 %v683
    %v1027 = vpop.f32.mrf.mxu0
    %v1028 = vadd.f32 %v951, %v1027
    %1029 = vmatmul.f32.gmra.mxu0 %v690
    %v1030 = vpop.f32.mrf.mxu0
    %v1031 = vadd.f32 %v954, %v1030
    %1032 = vmatmul.f32.gmra.mxu0 %v697
    %v1033 = vpop.f32.mrf.mxu0
    %v1034 = vadd.f32 %v957, %v1033
    %1035 = vmatmul.f32.gmra.mxu0 %v704
    %v1036 = vpop.f32.mrf.mxu0
    %v1037 = vadd.f32 %v960, %v1036
    %1038 = vmatmul.f32.gmra.mxu0 %v711
    %v1039 = vpop.f32.mrf.mxu0
    %v1040 = vadd.f32 %v963, %v1039
    %1041 = vmatmul.f32.gmra.mxu0 %v718
    %v1042 = vpop.f32.mrf.mxu0
    %v1043 = vadd.f32 %v966, %v1042
    %1044 = vmatmul.f32.gmra.mxu0 %v725
    %v1045 = vpop.f32.mrf.mxu0
    %v1046 = vadd.f32 %v969, %v1045
    %1047 = vmatmul.f32.gmra.mxu0 %v732
    %v1048 = vpop.f32.mrf.mxu0
    %v1049 = vadd.f32 %v972, %v1048
    %1050 = vmatmul.f32.gmra.mxu0 %v739
    %v1051 = vpop.f32.mrf.mxu0
    %v1052 = vadd.f32 %v975, %v1051
    %1053 = vdwg.mxu0
    %1054 = vmatpush.msra.mxu0 %v289
    %1055 = vmatpush.msra.mxu0 %v288
    %1056 = vmatpush.msra.mxu0 %v287
    %1057 = vmatpush.msra.mxu0 %v286
    %1058 = vmatpush.msra.mxu0 %v285
    %1059 = vmatpush.msra.mxu0 %v284
    %1060 = vmatpush.msra.mxu0 %v283
    %1061 = vmatpush.msra.mxu0 %v282
    %1062 = vmatpush.msra.mxu0 %v281
    %1063 = vmatpush.msra.mxu0 %v280
    %1064 = vmatpush.msra.mxu0 %v279
    %1065 = vmatpush.msra.mxu0 %v278
    %1066 = vmatpush.msra.mxu0 %v277
    %1067 = vmatpush.msra.mxu0 %v276
    %1068 = vmatpush.msra.mxu0 %v275
    %1069 = vmatpush.msra.mxu0 %v274
    %1070 = vmatmul.f32.gmra.mxu0 %v607
    %v1071 = vpop.f32.mrf.mxu0
    %v1072 = vadd.f32 %v995, %v1071
    %1073 = vmatmul.f32.gmra.mxu0 %v614
    %v1074 = vpop.f32.mrf.mxu0
    %v1075 = vadd.f32 %v998, %v1074
    %1076 = vmatmul.f32.gmra.mxu0 %v621
    %v1077 = vpop.f32.mrf.mxu0
    %v1078 = vadd.f32 %v1001, %v1077
    %1079 = vmatmul.f32.gmra.mxu0 %v628
    %v1080 = vpop.f32.mrf.mxu0
    %v1081 = vadd.f32 %v1004, %v1080
    %1082 = vmatmul.f32.gmra.mxu0 %v635
    %v1083 = vpop.f32.mrf.mxu0
    %v1084 = vadd.f32 %v1007, %v1083
    %1085 = vmatmul.f32.gmra.mxu0 %v642
    %v1086 = vpop.f32.mrf.mxu0
    %v1087 = vadd.f32 %v1010, %v1086
    %1088 = vmatmul.f32.gmra.mxu0 %v649
    %v1089 = vpop.f32.mrf.mxu0
    %v1090 = vadd.f32 %v1013, %v1089
    %1091 = vmatmul.f32.gmra.mxu0 %v656
    %v1092 = vpop.f32.mrf.mxu0
    %v1093 = vadd.f32 %v1016, %v1092
    %1094 = vmatmul.f32.gmra.mxu0 %v663
    %v1095 = vpop.f32.mrf.mxu0
    %v1096 = vadd.f32 %v1019, %v1095
    %1097 = vmatmul.f32.gmra.mxu0 %v670
    %v1098 = vpop.f32.mrf.mxu0
    %v1099 = vadd.f32 %v1022, %v1098
    %1100 = vmatmul.f32.gmra.mxu0 %v677
    %v1101 = vpop.f32.mrf.mxu0
    %v1102 = vadd.f32 %v1025, %v1101
    %1103 = vmatmul.f32.gmra.mxu0 %v684
    %v1104 = vpop.f32.mrf.mxu0
    %v1105 = vadd.f32 %v1028, %v1104
    %1106 = vmatmul.f32.gmra.mxu0 %v691
    %v1107 = vpop.f32.mrf.mxu0
    %v1108 = vadd.f32 %v1031, %v1107
    %1109 = vmatmul.f32.gmra.mxu0 %v698
    %v1110 = vpop.f32.mrf.mxu0
    %v1111 = vadd.f32 %v1034, %v1110
    %1112 = vmatmul.f32.gmra.mxu0 %v705
    %v1113 = vpop.f32.mrf.mxu0
    %v1114 = vadd.f32 %v1037, %v1113
    %1115 = vmatmul.f32.gmra.mxu0 %v712
    %v1116 = vpop.f32.mrf.mxu0
    %v1117 = vadd.f32 %v1040, %v1116
    %1118 = vmatmul.f32.gmra.mxu0 %v719
    %v1119 = vpop.f32.mrf.mxu0
    %v1120 = vadd.f32 %v1043, %v1119
    %1121 = vmatmul.f32.gmra.mxu0 %v726
    %v1122 = vpop.f32.mrf.mxu0
    %v1123 = vadd.f32 %v1046, %v1122
    %1124 = vmatmul.f32.gmra.mxu0 %v733
    %v1125 = vpop.f32.mrf.mxu0
    %v1126 = vadd.f32 %v1049, %v1125
    %1127 = vmatmul.f32.gmra.mxu0 %v740
    %v1128 = vpop.f32.mrf.mxu0
    %v1129 = vadd.f32 %v1052, %v1128
    %1130 = vdwg.mxu0
    %1131 = vmatpush.msra.mxu0 %v305
    %1132 = vmatpush.msra.mxu0 %v304
    %1133 = vmatpush.msra.mxu0 %v303
    %1134 = vmatpush.msra.mxu0 %v302
    %1135 = vmatpush.msra.mxu0 %v301
    %1136 = vmatpush.msra.mxu0 %v300
    %1137 = vmatpush.msra.mxu0 %v299
    %1138 = vmatpush.msra.mxu0 %v298
    %1139 = vmatpush.msra.mxu0 %v297
    %1140 = vmatpush.msra.mxu0 %v296
    %1141 = vmatpush.msra.mxu0 %v295
    %1142 = vmatpush.msra.mxu0 %v294
    %1143 = vmatpush.msra.mxu0 %v293
    %1144 = vmatpush.msra.mxu0 %v292
    %1145 = vmatpush.msra.mxu0 %v291
    %1146 = vmatpush.msra.mxu0 %v290
    %1147 = vmatmul.f32.gmra.mxu0 %v608
    %v1148 = vpop.f32.mrf.mxu0
    %v1149 = vadd.f32 %v1072, %v1148
    %1150 = vmatmul.f32.gmra.mxu0 %v615
    %v1151 = vpop.f32.mrf.mxu0
    %v1152 = vadd.f32 %v1075, %v1151
    %1153 = vmatmul.f32.gmra.mxu0 %v622
    %v1154 = vpop.f32.mrf.mxu0
    %v1155 = vadd.f32 %v1078, %v1154
    %1156 = vmatmul.f32.gmra.mxu0 %v629
    %v1157 = vpop.f32.mrf.mxu0
    %v1158 = vadd.f32 %v1081, %v1157
    %1159 = vmatmul.f32.gmra.mxu0 %v636
    %v1160 = vpop.f32.mrf.mxu0
    %v1161 = vadd.f32 %v1084, %v1160
    %1162 = vmatmul.f32.gmra.mxu0 %v643
    %v1163 = vpop.f32.mrf.mxu0
    %v1164 = vadd.f32 %v1087, %v1163
    %1165 = vmatmul.f32.gmra.mxu0 %v650
    %v1166 = vpop.f32.mrf.mxu0
    %v1167 = vadd.f32 %v1090, %v1166
    %1168 = vmatmul.f32.gmra.mxu0 %v657
    %v1169 = vpop.f32.mrf.mxu0
    %v1170 = vadd.f32 %v1093, %v1169
    %1171 = vmatmul.f32.gmra.mxu0 %v664
    %v1172 = vpop.f32.mrf.mxu0
    %v1173 = vadd.f32 %v1096, %v1172
    %1174 = vmatmul.f32.gmra.mxu0 %v671
    %v1175 = vpop.f32.mrf.mxu0
    %v1176 = vadd.f32 %v1099, %v1175
    %1177 = vmatmul.f32.gmra.mxu0 %v678
    %v1178 = vpop.f32.mrf.mxu0
    %v1179 = vadd.f32 %v1102, %v1178
    %1180 = vmatmul.f32.gmra.mxu0 %v685
    %v1181 = vpop.f32.mrf.mxu0
    %v1182 = vadd.f32 %v1105, %v1181
    %1183 = vmatmul.f32.gmra.mxu0 %v692
    %v1184 = vpop.f32.mrf.mxu0
    %v1185 = vadd.f32 %v1108, %v1184
    %1186 = vmatmul.f32.gmra.mxu0 %v699
    %v1187 = vpop.f32.mrf.mxu0
    %v1188 = vadd.f32 %v1111, %v1187
    %1189 = vmatmul.f32.gmra.mxu0 %v706
    %v1190 = vpop.f32.mrf.mxu0
    %v1191 = vadd.f32 %v1114, %v1190
    %1192 = vmatmul.f32.gmra.mxu0 %v713
    %v1193 = vpop.f32.mrf.mxu0
    %v1194 = vadd.f32 %v1117, %v1193
    %1195 = vmatmul.f32.gmra.mxu0 %v720
    %v1196 = vpop.f32.mrf.mxu0
    %v1197 = vadd.f32 %v1120, %v1196
    %1198 = vmatmul.f32.gmra.mxu0 %v727
    %v1199 = vpop.f32.mrf.mxu0
    %v1200 = vadd.f32 %v1123, %v1199
    %1201 = vmatmul.f32.gmra.mxu0 %v734
    %v1202 = vpop.f32.mrf.mxu0
    %v1203 = vadd.f32 %v1126, %v1202
    %1204 = vmatmul.f32.gmra.mxu0 %v741
    %v1205 = vpop.f32.mrf.mxu0
    %v1206 = vadd.f32 %v1129, %v1205
    %1207 = vdwg.mxu0
    %1208 = vmatpush.msra.mxu0 %v321
    %1209 = vmatpush.msra.mxu0 %v320
    %1210 = vmatpush.msra.mxu0 %v319
    %1211 = vmatpush.msra.mxu0 %v318
    %1212 = vmatpush.msra.mxu0 %v317
    %1213 = vmatpush.msra.mxu0 %v316
    %1214 = vmatpush.msra.mxu0 %v315
    %1215 = vmatpush.msra.mxu0 %v314
    %1216 = vmatpush.msra.mxu0 %v313
    %1217 = vmatpush.msra.mxu0 %v312
    %1218 = vmatpush.msra.mxu0 %v311
    %1219 = vmatpush.msra.mxu0 %v310
    %1220 = vmatpush.msra.mxu0 %v309
    %1221 = vmatpush.msra.mxu0 %v308
    %1222 = vmatpush.msra.mxu0 %v307
    %1223 = vmatpush.msra.mxu0 %v306
    %1224 = vmatmul.f32.gmra.mxu0 %v609
    %v1225 = vpop.f32.mrf.mxu0
    %v1226 = vadd.f32 %v1149, %v1225
    %1227 = vmatmul.f32.gmra.mxu0 %v616
    %v1228 = vpop.f32.mrf.mxu0
    %v1229 = vadd.f32 %v1152, %v1228
    %1230 = vmatmul.f32.gmra.mxu0 %v623
    %v1231 = vpop.f32.mrf.mxu0
    %v1232 = vadd.f32 %v1155, %v1231
    %1233 = vmatmul.f32.gmra.mxu0 %v630
    %v1234 = vpop.f32.mrf.mxu0
    %v1235 = vadd.f32 %v1158, %v1234
    %1236 = vmatmul.f32.gmra.mxu0 %v637
    %v1237 = vpop.f32.mrf.mxu0
    %v1238 = vadd.f32 %v1161, %v1237
    %1239 = vmatmul.f32.gmra.mxu0 %v644
    %v1240 = vpop.f32.mrf.mxu0
    %v1241 = vadd.f32 %v1164, %v1240
    %1242 = vmatmul.f32.gmra.mxu0 %v651
    %v1243 = vpop.f32.mrf.mxu0
    %v1244 = vadd.f32 %v1167, %v1243
    %1245 = vmatmul.f32.gmra.mxu0 %v658
    %v1246 = vpop.f32.mrf.mxu0
    %v1247 = vadd.f32 %v1170, %v1246
    %1248 = vmatmul.f32.gmra.mxu0 %v665
    %v1249 = vpop.f32.mrf.mxu0
    %v1250 = vadd.f32 %v1173, %v1249
    %1251 = vmatmul.f32.gmra.mxu0 %v672
    %v1252 = vpop.f32.mrf.mxu0
    %v1253 = vadd.f32 %v1176, %v1252
    %1254 = vmatmul.f32.gmra.mxu0 %v679
    %v1255 = vpop.f32.mrf.mxu0
    %v1256 = vadd.f32 %v1179, %v1255
    %1257 = vmatmul.f32.gmra.mxu0 %v686
    %v1258 = vpop.f32.mrf.mxu0
    %v1259 = vadd.f32 %v1182, %v1258
    %1260 = vmatmul.f32.gmra.mxu0 %v693
    %v1261 = vpop.f32.mrf.mxu0
    %v1262 = vadd.f32 %v1185, %v1261
    %1263 = vmatmul.f32.gmra.mxu0 %v700
    %v1264 = vpop.f32.mrf.mxu0
    %v1265 = vadd.f32 %v1188, %v1264
    %1266 = vmatmul.f32.gmra.mxu0 %v707
    %v1267 = vpop.f32.mrf.mxu0
    %v1268 = vadd.f32 %v1191, %v1267
    %1269 = vmatmul.f32.gmra.mxu0 %v714
    %v1270 = vpop.f32.mrf.mxu0
    %v1271 = vadd.f32 %v1194, %v1270
    %1272 = vmatmul.f32.gmra.mxu0 %v721
    %v1273 = vpop.f32.mrf.mxu0
    %v1274 = vadd.f32 %v1197, %v1273
    %1275 = vmatmul.f32.gmra.mxu0 %v728
    %v1276 = vpop.f32.mrf.mxu0
    %v1277 = vadd.f32 %v1200, %v1276
    %1278 = vmatmul.f32.gmra.mxu0 %v735
    %v1279 = vpop.f32.mrf.mxu0
    %v1280 = vadd.f32 %v1203, %v1279
    %1281 = vmatmul.f32.gmra.mxu0 %v742
    %v1282 = vpop.f32.mrf.mxu0
    %v1283 = vadd.f32 %v1206, %v1282
    %1284 = vdwg.mxu0
    %v1285 = vadd.f32 %v1226, 0.0
    %vm1286 = vcmp.gt.f32.partialorder %v1285, 0.5
    %v1287 = vsel %vm1286, 1, 0
    %v1288 = vcvt.s32.f32 %v1287
    %v1289 = vadd.f32 %v1288, 0.0
    %v1290 = vmul.f32 %v1285, 0.2
    %v1291 = vsub.f32 1.0, %v1288
    %v1292 = vmul.f32 %v1290, %v1291
    %v1293 = vadd.f32 %v1292, %v1229
    %vm1294 = vcmp.gt.f32.partialorder %v1293, 0.5
    %v1295 = vsel %vm1294, 1, 0
    %v1296 = vcvt.s32.f32 %v1295
    %v1297 = vadd.f32 %v1289, %v1296
    %v1298 = vmul.f32 %v1293, 0.2
    %v1299 = vsub.f32 1.0, %v1296
    %v1300 = vmul.f32 %v1298, %v1299
    %v1301 = vadd.f32 %v1300, %v1232
    %vm1302 = vcmp.gt.f32.partialorder %v1301, 0.5
    %v1303 = vsel %vm1302, 1, 0
    %v1304 = vcvt.s32.f32 %v1303
    %v1305 = vadd.f32 %v1297, %v1304
    %v1306 = vmul.f32 %v1301, 0.2
    %v1307 = vsub.f32 1.0, %v1304
    %v1308 = vmul.f32 %v1306, %v1307
    %v1309 = vadd.f32 %v1308, %v1235
    %vm1310 = vcmp.gt.f32.partialorder %v1309, 0.5
    %v1311 = vsel %vm1310, 1, 0
    %v1312 = vcvt.s32.f32 %v1311
    %v1313 = vadd.f32 %v1305, %v1312
    %v1314 = vmul.f32 %v1309, 0.2
    %v1315 = vsub.f32 1.0, %v1312
    %v1316 = vmul.f32 %v1314, %v1315
    %v1317 = vadd.f32 %v1316, %v1238
    %vm1318 = vcmp.gt.f32.partialorder %v1317, 0.5
    %v1319 = vsel %vm1318, 1, 0
    %v1320 = vcvt.s32.f32 %v1319
    %v1321 = vadd.f32 %v1313, %v1320
    %v1322 = vmul.f32 %v1317, 0.2
    %v1323 = vsub.f32 1.0, %v1320
    %v1324 = vmul.f32 %v1322, %v1323
    %v1325 = vadd.f32 %v1324, %v1241
    %vm1326 = vcmp.gt.f32.partialorder %v1325, 0.5
    %v1327 = vsel %vm1326, 1, 0
    %v1328 = vcvt.s32.f32 %v1327
    %v1329 = vadd.f32 %v1321, %v1328
    %v1330 = vmul.f32 %v1325, 0.2
    %v1331 = vsub.f32 1.0, %v1328
    %v1332 = vmul.f32 %v1330, %v1331
    %v1333 = vadd.f32 %v1332, %v1244
    %vm1334 = vcmp.gt.f32.partialorder %v1333, 0.5
    %v1335 = vsel %vm1334, 1, 0
    %v1336 = vcvt.s32.f32 %v1335
    %v1337 = vadd.f32 %v1329, %v1336
    %v1338 = vmul.f32 %v1333, 0.2
    %v1339 = vsub.f32 1.0, %v1336
    %v1340 = vmul.f32 %v1338, %v1339
    %v1341 = vadd.f32 %v1340, %v1247
    %vm1342 = vcmp.gt.f32.partialorder %v1341, 0.5
    %v1343 = vsel %vm1342, 1, 0
    %v1344 = vcvt.s32.f32 %v1343
    %v1345 = vadd.f32 %v1337, %v1344
    %v1346 = vmul.f32 %v1341, 0.2
    %v1347 = vsub.f32 1.0, %v1344
    %v1348 = vmul.f32 %v1346, %v1347
    %v1349 = vadd.f32 %v1348, %v1250
    %vm1350 = vcmp.gt.f32.partialorder %v1349, 0.5
    %v1351 = vsel %vm1350, 1, 0
    %v1352 = vcvt.s32.f32 %v1351
    %v1353 = vadd.f32 %v1345, %v1352
    %v1354 = vmul.f32 %v1349, 0.2
    %v1355 = vsub.f32 1.0, %v1352
    %v1356 = vmul.f32 %v1354, %v1355
    %v1357 = vadd.f32 %v1356, %v1253
    %vm1358 = vcmp.gt.f32.partialorder %v1357, 0.5
    %v1359 = vsel %vm1358, 1, 0
    %v1360 = vcvt.s32.f32 %v1359
    %v1361 = vadd.f32 %v1353, %v1360
    %v1362 = vmul.f32 %v1357, 0.2
    %v1363 = vsub.f32 1.0, %v1360
    %v1364 = vmul.f32 %v1362, %v1363
    %v1365 = vadd.f32 %v1364, %v1256
    %vm1366 = vcmp.gt.f32.partialorder %v1365, 0.5
    %v1367 = vsel %vm1366, 1, 0
    %v1368 = vcvt.s32.f32 %v1367
    %v1369 = vadd.f32 %v1361, %v1368
    %v1370 = vmul.f32 %v1365, 0.2
    %v1371 = vsub.f32 1.0, %v1368
    %v1372 = vmul.f32 %v1370, %v1371
    %v1373 = vadd.f32 %v1372, %v1259
    %vm1374 = vcmp.gt.f32.partialorder %v1373, 0.5
    %v1375 = vsel %vm1374, 1, 0
    %v1376 = vcvt.s32.f32 %v1375
    %v1377 = vadd.f32 %v1369, %v1376
    %v1378 = vmul.f32 %v1373, 0.2
    %v1379 = vsub.f32 1.0, %v1376
    %v1380 = vmul.f32 %v1378, %v1379
    %v1381 = vadd.f32 %v1380, %v1262
    %vm1382 = vcmp.gt.f32.partialorder %v1381, 0.5
    %v1383 = vsel %vm1382, 1, 0
    %v1384 = vcvt.s32.f32 %v1383
    %v1385 = vadd.f32 %v1377, %v1384
    %v1386 = vmul.f32 %v1381, 0.2
    %v1387 = vsub.f32 1.0, %v1384
    %v1388 = vmul.f32 %v1386, %v1387
    %v1389 = vadd.f32 %v1388, %v1265
    %vm1390 = vcmp.gt.f32.partialorder %v1389, 0.5
    %v1391 = vsel %vm1390, 1, 0
    %v1392 = vcvt.s32.f32 %v1391
    %v1393 = vadd.f32 %v1385, %v1392
    %v1394 = vmul.f32 %v1389, 0.2
    %v1395 = vsub.f32 1.0, %v1392
    %v1396 = vmul.f32 %v1394, %v1395
    %v1397 = vadd.f32 %v1396, %v1268
    %vm1398 = vcmp.gt.f32.partialorder %v1397, 0.5
    %v1399 = vsel %vm1398, 1, 0
    %v1400 = vcvt.s32.f32 %v1399
    %v1401 = vadd.f32 %v1393, %v1400
    %v1402 = vmul.f32 %v1397, 0.2
    %v1403 = vsub.f32 1.0, %v1400
    %v1404 = vmul.f32 %v1402, %v1403
    %v1405 = vadd.f32 %v1404, %v1271
    %vm1406 = vcmp.gt.f32.partialorder %v1405, 0.5
    %v1407 = vsel %vm1406, 1, 0
    %v1408 = vcvt.s32.f32 %v1407
    %v1409 = vadd.f32 %v1401, %v1408
    %v1410 = vmul.f32 %v1405, 0.2
    %v1411 = vsub.f32 1.0, %v1408
    %v1412 = vmul.f32 %v1410, %v1411
    %v1413 = vadd.f32 %v1412, %v1274
    %vm1414 = vcmp.gt.f32.partialorder %v1413, 0.5
    %v1415 = vsel %vm1414, 1, 0
    %v1416 = vcvt.s32.f32 %v1415
    %v1417 = vadd.f32 %v1409, %v1416
    %v1418 = vmul.f32 %v1413, 0.2
    %v1419 = vsub.f32 1.0, %v1416
    %v1420 = vmul.f32 %v1418, %v1419
    %v1421 = vadd.f32 %v1420, %v1277
    %vm1422 = vcmp.gt.f32.partialorder %v1421, 0.5
    %v1423 = vsel %vm1422, 1, 0
    %v1424 = vcvt.s32.f32 %v1423
    %v1425 = vadd.f32 %v1417, %v1424
    %v1426 = vmul.f32 %v1421, 0.2
    %v1427 = vsub.f32 1.0, %v1424
    %v1428 = vmul.f32 %v1426, %v1427
    %v1429 = vadd.f32 %v1428, %v1280
    %vm1430 = vcmp.gt.f32.partialorder %v1429, 0.5
    %v1431 = vsel %vm1430, 1, 0
    %v1432 = vcvt.s32.f32 %v1431
    %v1433 = vadd.f32 %v1425, %v1432
    %v1434 = vmul.f32 %v1429, 0.2
    %v1435 = vsub.f32 1.0, %v1432
    %v1436 = vmul.f32 %v1434, %v1435
    %v1437 = vadd.f32 %v1436, %v1283
    %vm1438 = vcmp.gt.f32.partialorder %v1437, 0.5
    %v1439 = vsel %vm1438, 1, 0
    %v1440 = vcvt.s32.f32 %v1439
    %v1441 = vadd.f32 %v1433, %v1440
    %v1442 = vmul.f32 %v1441, 0.05
    %1443 = vst [vmem:[#allocation8] sm:$0xff] %v1442
    // Predicated region
    $region30: #{tpu_custom_call.1} parent=1 // pred_check
      _
    $region31: #{tpu_custom_call.1} parent=1 // pred_check_branch
      %1445 = sbr.rel (0) target = $region33
    $region32: #{tpu_custom_call.1} parent=1 // pred_region
      %1447 = vsyncadd [#allocation4], 0
      %s1449 = sshll.u32 [#allocation8], 4
      %s1450 = int_to_ptr.vmem [resolvable:$true] %s1449
      %s1451 = sshll.u32 %s4, 4
      %s1452 = int_to_ptr.hbm [resolvable:$true] %s1451
      %1454 = dma.vmem_to_hbm [thread:$0]  %s1450, 128, %s1452, [#allocation4]
    $region33: #{tpu_custom_call.1} parent=1 // pred_fallthru
      _
    // Predicated region
    $region34: #{tpu_custom_call.1} parent=1 // pred_check
      _
    $region35: #{tpu_custom_call.1} parent=1 // pred_check_branch
      %1456 = sbr.rel (0) target = $region37
    $region36: #{tpu_custom_call.1} parent=1 // pred_region
      %1458 = dma.done [#allocation4], 128
    $region37: #{tpu_custom_call.1} parent=1 // pred_fallthru
      _
    %1459 = vsyncpa [#allocation3], 1
    %1460 = vsyncpa [#allocation6], 1
    %1461 = vsyncpa [#allocation4], 1

</llo_original>
